<compile_context>
chip_gen: v6e
topology: v6e:2x2x1
jax: 0.10.0
libtpu: 0.0.40
codegen_flags: <defaults>
</compile_context>

<pallas_src>
import jax
import jax.numpy as jnp
from jax.experimental import pallas as pl
from jax.experimental.pallas import tpu as pltpu

LN_EPS = 1e-3


def _round_up(x, m):
    return ((x + m - 1) // m) * m


def _cdiv(a, b):
    return (a + b - 1) // b


def _pad_to(a, shape, dtype):
    a = a.astype(dtype)
    pads = [(0, s - d) for d, s in zip(a.shape, shape)]
    return jnp.pad(a, pads)


def _make_mlp_kernel(num_layers, true_units, compute_dtype):
    """Kernel closure for a fixed (static) number of hidden layers."""
    inv_units = 1.0 / float(true_units)

    def kernel(*refs):
        if num_layers > 1:
            (x_ref, w0_ref, wrest_ref, gam_ref, bet_ref,
             wm_ref, bm_ref, out_ref) = refs
        else:
            (x_ref, w0_ref, gam_ref, bet_ref, wm_ref, bm_ref, out_ref) = refs
            wrest_ref = None

        h = x_ref[...]                               # compute_dtype activations
        for l in range(num_layers):
            w = w0_ref[...] if l == 0 else wrest_ref[l - 1]
            gamma = gam_ref[l]                       # [1, U] f32, zero padded
            beta = bet_ref[l]                        # [1, U] f32, zero padded

            # Linear (bias=False): bf16 operands, f32 MXU accumulation.
            h = jnp.dot(h.astype(compute_dtype), w,
                        preferred_element_type=jnp.float32)

            # LayerNorm over the *true* units. Padded lanes of h are exactly
            # zero (padded weight columns are zero), so the plain sums already
            # cover only the true lanes; divide by the true count.
            mu = jnp.sum(h, axis=-1, keepdims=True) * inv_units
            sumsq = jnp.sum(h * h, axis=-1, keepdims=True) * inv_units
            var = jnp.maximum(sumsq - mu * mu, 0.0)  # f32; eps=1e-3 dominates
            hn = (h - mu) * jax.lax.rsqrt(var + LN_EPS)
            hn = hn * gamma + beta                   # padded gamma/beta are 0

            # SiLU: exp + reciprocal on the EUP slot, multiply on the VPU.
            s = pl.reciprocal(1.0 + jnp.exp(-hn), approx=True)
            h = hn * s

        mean = jnp.dot(h.astype(compute_dtype), wm_ref[...],
                       preferred_element_type=jnp.float32) + bm_ref[...]
        # 'normal' dist head: distribution mean = tanh(mean)
        out_ref[...] = jnp.tanh(mean).astype(out_ref.dtype)

    return kernel


def mlp_forward(features, params, *, min_std=0.1, max_std=1.0, std=1.0,
                lane_multiple=128, compute_dtype=jnp.bfloat16,
                out_dtype=jnp.bfloat16):
    """Run the MLP forward pass. Returns (tanh(mean), std) of the Normal dist."""
    hidden = params["hidden"]           # list of (w[d_in,units], gamma[units], beta[units])
    w_mean, b_mean = params["mean"]     # ([units, out_dim], [out_dim])

    num_layers = len(hidden)
    batch, inp_dim = features.shape
    units = hidden[0][0].shape[1]
    out_dim = w_mean.shape[1]

    # Lane-dense padding. 128 is correct on every generation; Dreamer's real
    # hidden sizes (512/1024) are already multiples of 256, so the v6e/v7x
    # 2x256^2 MXU is fully fed without bumping the multiple.
    inp_pad = _round_up(inp_dim, lane_multiple)
    units_pad = _round_up(units, lane_multiple)
    out_pad = _round_up(out_dim, lane_multiple)

    csize = jnp.dtype(compute_dtype).itemsize
    osize = jnp.dtype(out_dtype).itemsize

    # Resident (single-buffered) parameter footprint.
    weight_bytes = (inp_pad * units_pad * csize
                    + max(num_layers - 1, 0) * units_pad * units_pad * csize
                    + 2 * num_layers * units_pad * 4
                    + units_pad * out_pad * csize
                    + out_pad * 4)

    # Generation-aware VMEM budget: ~80% of capacity (128 MiB on v5e/v6e,
    # 64 MiB per TensorCore on v7x), leaving headroom for Mosaic scratch,
    # semaphores and pipeline bookkeeping.
    try:
        vmem_cap = int(pltpu.get_tpu_info().vmem_capacity_bytes)
    except Exception:  # pragma: no cover - conservative fallback
        vmem_cap = 64 * 1024 * 1024
    vmem_budget = int(0.8 * vmem_cap)

    # Per-row VMEM: double-buffered in/out activation tiles + live f32 temps.
    per_row = 2 * inp_pad * csize + 2 * out_pad * osize + 4 * units_pad * 4

    # Largest batch tile (<=512) that fits next to the resident weights.
    tile_cap = 512
    while tile_cap > 16 and weight_bytes + tile_cap * per_row > vmem_budget:
        tile_cap //= 2

    # Minimal-padding batch tiling: smallest step count whose tile fits the cap.
    # Sublane alignment 16 covers bf16 packing of the activation / output tiles.
    row_align = 16 if min(csize, osize) < 4 else 8
    batch_al = _round_up(batch, row_align)
    steps = max(1, _cdiv(batch_al, tile_cap))
    tile_b = _round_up(_cdiv(batch, steps), row_align)
    while tile_b > tile_cap:
        steps += 1
        tile_b = _round_up(_cdiv(batch, steps), row_align)
    batch_pad = steps * tile_b
    grid = (steps,)

    # --- pad / stack parameters and input once on the host -------------------
    x_p = _pad_to(features, (batch_pad, inp_pad), compute_dtype)
    w0 = _pad_to(hidden[0][0], (inp_pad, units_pad), compute_dtype)
    gammas = jnp.stack([_pad_to(g.reshape(1, -1), (1, units_pad), jnp.float32)
                        for (_, g, _) in hidden])           # [L, 1, U]
    betas = jnp.stack([_pad_to(b.reshape(1, -1), (1, units_pad), jnp.float32)
                       for (_, _, b) in hidden])             # [L, 1, U]
    wm = _pad_to(w_mean, (units_pad, out_pad), compute_dtype)
    bm = _pad_to(b_mean.reshape(1, -1), (1, out_pad), jnp.float32)

    inputs = [x_p, w0]
    if num_layers > 1:
        wrest = jnp.stack([_pad_to(w, (units_pad, units_pad), compute_dtype)
                           for (w, _, _) in hidden[1:]])     # [L-1, U, U]
        inputs.append(wrest)
    inputs += [gammas, betas, wm, bm]

    # --- block specs ----------------------------------------------------------
    def _resident(a):
        # Whole-array, grid-invariant, single-buffered parameter block.
        nd = a.ndim
        return pl.BlockSpec(a.shape, lambda i, _n=nd: (0,) * _n,
                            pipeline_mode=pl.Buffered(1))

    in_specs = [pl.BlockSpec((tile_b, inp_pad), lambda i: (i, 0))]
    in_specs += [_resident(a) for a in inputs[1:]]
    out_specs = pl.BlockSpec((tile_b, out_pad), lambda i: (i, 0))

    # --- cost estimate (advisory, helps XLA schedule around the call) --------
    flops = (2 * batch_pad * inp_pad * units_pad
             + 2 * batch_pad * max(num_layers - 1, 0) * units_pad * units_pad
             + 2 * batch_pad * units_pad * out_pad)
    transcendentals = (batch_pad * num_layers * 2 * units_pad   # exp + rcp (SiLU)
                       + batch_pad * num_layers                 # rsqrt per row/layer
                       + batch_pad * out_pad)                   # tanh
    bytes_accessed = (sum(int(a.size) * a.dtype.itemsize for a in inputs)
                      + batch_pad * out_pad * osize)
    cost = pl.CostEstimate(flops=int(flops),
                           transcendentals=int(transcendentals),
                           bytes_accessed=int(bytes_accessed))

    vmem_limit = int(min(vmem_budget,
                         max(32 * 1024 * 1024,
                             int(1.25 * (weight_bytes + tile_b * per_row))
                             + (2 << 20))))

    kernel = _make_mlp_kernel(num_layers, units, compute_dtype)

    out = pl.pallas_call(
        kernel,
        out_shape=jax.ShapeDtypeStruct((batch_pad, out_pad), out_dtype),
        grid=grid,
        in_specs=in_specs,
        out_specs=out_specs,
        compiler_params=pltpu.CompilerParams(
            dimension_semantics=("parallel",),   # 2 TCs on v7x; neutral on v5e/v6e
            vmem_limit_bytes=vmem_limit),
        cost_estimate=cost,
    )(*inputs)

    out = out[:batch, :out_dim]

    # std is not learned (scalar); computed host-side (no data-dependent work).
    std_val = (max_std - min_std) * jax.nn.sigmoid(
        jnp.asarray(std, jnp.float32) + 2.0) + min_std
    return out, std_val


def mlp_reference(features, params, compute_dtype=jnp.bfloat16):
    """Pure-JAX reference mirroring the kernel's bf16-matmul / f32-accumulate math."""
    h = features
    for (w, g, b) in params["hidden"]:
        h = jnp.dot(h.astype(compute_dtype), w.astype(compute_dtype),
                    preferred_element_type=jnp.float32)
        mu = jnp.mean(h, axis=-1, keepdims=True)
        var = jnp.mean((h - mu) ** 2, axis=-1, keepdims=True)
        h = (h - mu) * jax.lax.rsqrt(var + LN_EPS)
        h = h * g + b
        h = h * jax.nn.sigmoid(h)
    w_m, b_m = params["mean"]
    mean = jnp.dot(h.astype(compute_dtype), w_m.astype(compute_dtype),
                   preferred_element_type=jnp.float32) + b_m
    return jnp.tanh(mean)


def init_params(key, inp_dim, units, layers, out_dim, outscale=1.0):
    """Deterministic synthetic init matching the module's parameter shapes."""
    params = {"hidden": [], "mean": None}
    d_in = inp_dim
    for _ in range(layers):
        key, k = jax.random.split(key)
        # torch Linear weight is [units, d_in]; we store its transpose [d_in, units]
        w = jax.random.normal(k, (d_in, units), jnp.float32) * (1.0 / jnp.sqrt(d_in))
        gamma = jnp.ones((units,), jnp.float32)   # LayerNorm weight
        beta = jnp.zeros((units,), jnp.float32)   # LayerNorm bias
        params["hidden"].append((w, gamma, beta))
        d_in = units
    key, k1, _ = jax.random.split(key, 3)
    lim = outscale / jnp.sqrt(jnp.float32(d_in))
    w_mean = jax.random.uniform(k1, (d_in, out_dim), jnp.float32, -lim, lim)
    b_mean = jnp.zeros((out_dim,), jnp.float32)
    params["mean"] = (w_mean, b_mean)
    return params


if __name__ == "__main__":
    # Dreamer applies this MLP to flattened [B*T, D] features; a non-multiple
    # batch exercises the minimal-padding tiling and slicing paths.
    batch, inp_dim, units, num_layers, out_dim = 300, 16, 32, 2, 8

    key = jax.random.PRNGKey(0)
    key, kx = jax.random.split(key)
    features = jax.random.normal(kx, (batch, inp_dim), jnp.float32)

    params = init_params(key, inp_dim, units, num_layers, out_dim)

    mean_tanh, std_val = mlp_forward(features, params)
    mean_tanh = jax.block_until_ready(mean_tanh)
    std_val = jax.block_until_ready(std_val)

    ref = jax.block_until_ready(mlp_reference(features, params))

    assert mean_tanh.shape == (batch, out_dim)
    assert bool(jnp.all(jnp.isfinite(mean_tanh.astype(jnp.float32))))
    max_err = float(jnp.max(jnp.abs(mean_tanh.astype(jnp.float32) - ref)))
    assert max_err < 5e-2, f"max abs err vs reference: {max_err}"
    print("KERNEL_OK")
</pallas_src>

<mosaic_0001>
module attributes {stable_mosaic.version = 11 : i64} {
  func.func @kernel(%arg0: i32, %arg1: memref<304x128xbf16, #tpu.memory_space<vmem>>, %arg2: memref<128x128xbf16, #tpu.memory_space<vmem>>, %arg3: memref<1x128x128xbf16, #tpu.memory_space<vmem>>, %arg4: memref<2x1x128xf32, #tpu.memory_space<vmem>>, %arg5: memref<2x1x128xf32, #tpu.memory_space<vmem>>, %arg6: memref<128x128xbf16, #tpu.memory_space<vmem>>, %arg7: memref<1x128xf32, #tpu.memory_space<vmem>>, %arg8: memref<304x128xbf16, #tpu.memory_space<vmem>>) attributes {dimension_semantics = [#tpu.dimension_semantics<parallel>], iteration_bounds = array<i64: 1>, scalar_prefetch = 0 : i64, scratch_operands = 0 : i64, tpu.core_type = #tpu.core_type<tc>, window_params = [{transform_indices = @transform_0, window_bounds = array<i64: 304, 128>}, {pipeline_mode = #tpu.pipeline_mode<synchronous>, transform_indices = @transform_1, window_bounds = array<i64: 128, 128>}, {pipeline_mode = #tpu.pipeline_mode<synchronous>, transform_indices = @transform_2, window_bounds = array<i64: 1, 128, 128>}, {pipeline_mode = #tpu.pipeline_mode<synchronous>, transform_indices = @transform_3, window_bounds = array<i64: 2, 1, 128>}, {pipeline_mode = #tpu.pipeline_mode<synchronous>, transform_indices = @transform_4, window_bounds = array<i64: 2, 1, 128>}, {pipeline_mode = #tpu.pipeline_mode<synchronous>, transform_indices = @transform_5, window_bounds = array<i64: 128, 128>}, {pipeline_mode = #tpu.pipeline_mode<synchronous>, transform_indices = @transform_6, window_bounds = array<i64: 1, 128>}, {transform_indices = @transform_7, window_bounds = array<i64: 304, 128>}]} {
    %c0 = arith.constant 0 : index
    %c0_0 = arith.constant 0 : index
    %0 = vector.load %arg1[%c0, %c0_0] : memref<304x128xbf16, #tpu.memory_space<vmem>>, vector<304x128xbf16>
    %c0_1 = arith.constant 0 : index
    %c0_2 = arith.constant 0 : index
    %1 = vector.load %arg2[%c0_1, %c0_2] : memref<128x128xbf16, #tpu.memory_space<vmem>>, vector<128x128xbf16>
    %c0_3 = arith.constant 0 : index
    %c0_4 = arith.constant 0 : index
    %c0_5 = arith.constant 0 : index
    %2 = vector.load %arg4[%c0_3, %c0_4, %c0_5] : memref<2x1x128xf32, #tpu.memory_space<vmem>>, vector<1x1x128xf32>
    %3 = vector.shape_cast %2 : vector<1x1x128xf32> to vector<1x128xf32>
    %c0_6 = arith.constant 0 : index
    %c0_7 = arith.constant 0 : index
    %c0_8 = arith.constant 0 : index
    %4 = vector.load %arg5[%c0_6, %c0_7, %c0_8] : memref<2x1x128xf32, #tpu.memory_space<vmem>>, vector<1x1x128xf32>
    %5 = vector.shape_cast %4 : vector<1x1x128xf32> to vector<1x128xf32>
    %cst = arith.constant dense<0.000000e+00> : vector<304x128xf32>
    %6 = tpu.matmul %0, %1, %cst {dimension_numbers = #tpu.dot_dimension_numbers<[1], [0], [0], [1], [0, 0, 1, 1], [], []>} : vector<304x128xbf16>, vector<128x128xbf16>, vector<304x128xf32> -> vector<304x128xf32>
    %cst_9 = arith.constant dense<0.000000e+00> : vector<304xf32>
    %7 = vector.multi_reduction <add>, %6, %cst_9 [1] : vector<304x128xf32> to vector<304xf32>
    %8 = vector.shape_cast %7 : vector<304xf32> to vector<304x1xf32>
    %cst_10 = arith.constant 3.125000e-02 : f32
    %9 = vector.broadcast %cst_10 : f32 to vector<304x1xf32>
    %10 = arith.mulf %8, %9 : vector<304x1xf32>
    %11 = arith.mulf %6, %6 : vector<304x128xf32>
    %cst_11 = arith.constant dense<0.000000e+00> : vector<304xf32>
    %12 = vector.multi_reduction <add>, %11, %cst_11 [1] : vector<304x128xf32> to vector<304xf32>
    %13 = vector.shape_cast %12 : vector<304xf32> to vector<304x1xf32>
    %cst_12 = arith.constant 3.125000e-02 : f32
    %14 = vector.broadcast %cst_12 : f32 to vector<304x1xf32>
    %15 = arith.mulf %13, %14 : vector<304x1xf32>
    %16 = arith.mulf %10, %10 : vector<304x1xf32>
    %17 = arith.subf %15, %16 : vector<304x1xf32>
    %cst_13 = arith.constant 0.000000e+00 : f32
    %18 = vector.broadcast %cst_13 : f32 to vector<304x1xf32>
    %19 = arith.maximumf %17, %18 : vector<304x1xf32>
    %20 = vector.broadcast %10 : vector<304x1xf32> to vector<304x128xf32>
    %21 = arith.subf %6, %20 : vector<304x128xf32>
    %cst_14 = arith.constant 1.000000e-03 : f32
    %22 = vector.broadcast %cst_14 : f32 to vector<304x1xf32>
    %23 = arith.addf %19, %22 : vector<304x1xf32>
    %24 = math.rsqrt %23 : vector<304x1xf32>
    %25 = vector.broadcast %24 : vector<304x1xf32> to vector<304x128xf32>
    %26 = arith.mulf %21, %25 : vector<304x128xf32>
    %27 = vector.broadcast %3 : vector<1x128xf32> to vector<304x128xf32>
    %28 = arith.mulf %26, %27 : vector<304x128xf32>
    %29 = vector.broadcast %5 : vector<1x128xf32> to vector<304x128xf32>
    %30 = arith.addf %28, %29 : vector<304x128xf32>
    %cst_15 = arith.constant 0.000000e+00 : f32
    %31 = vector.broadcast %cst_15 : f32 to vector<304x128xf32>
    %32 = arith.subf %31, %30 : vector<304x128xf32>
    %33 = math.exp %32 : vector<304x128xf32>
    %cst_16 = arith.constant 1.000000e+00 : f32
    %34 = vector.broadcast %cst_16 : f32 to vector<304x128xf32>
    %35 = arith.addf %34, %33 : vector<304x128xf32>
    %36 = tpu.reciprocal %35 {approx = true} : vector<304x128xf32> -> vector<304x128xf32>
    %37 = arith.mulf %30, %36 : vector<304x128xf32>
    %c0_17 = arith.constant 0 : index
    %c0_18 = arith.constant 0 : index
    %c0_19 = arith.constant 0 : index
    %38 = vector.load %arg3[%c0_17, %c0_18, %c0_19] : memref<1x128x128xbf16, #tpu.memory_space<vmem>>, vector<1x128x128xbf16>
    %39 = vector.shape_cast %38 : vector<1x128x128xbf16> to vector<128x128xbf16>
    %c1 = arith.constant 1 : index
    %c0_20 = arith.constant 0 : index
    %c0_21 = arith.constant 0 : index
    %40 = vector.load %arg4[%c1, %c0_20, %c0_21] : memref<2x1x128xf32, #tpu.memory_space<vmem>>, vector<1x1x128xf32>
    %41 = vector.shape_cast %40 : vector<1x1x128xf32> to vector<1x128xf32>
    %c1_22 = arith.constant 1 : index
    %c0_23 = arith.constant 0 : index
    %c0_24 = arith.constant 0 : index
    %42 = vector.load %arg5[%c1_22, %c0_23, %c0_24] : memref<2x1x128xf32, #tpu.memory_space<vmem>>, vector<1x1x128xf32>
    %43 = vector.shape_cast %42 : vector<1x1x128xf32> to vector<1x128xf32>
    %44 = arith.truncf %37 : vector<304x128xf32> to vector<304x128xbf16>
    %cst_25 = arith.constant dense<0.000000e+00> : vector<304x128xf32>
    %45 = tpu.matmul %44, %39, %cst_25 {dimension_numbers = #tpu.dot_dimension_numbers<[1], [0], [0], [1], [0, 0, 1, 1], [], []>} : vector<304x128xbf16>, vector<128x128xbf16>, vector<304x128xf32> -> vector<304x128xf32>
    %cst_26 = arith.constant dense<0.000000e+00> : vector<304xf32>
    %46 = vector.multi_reduction <add>, %45, %cst_26 [1] : vector<304x128xf32> to vector<304xf32>
    %47 = vector.shape_cast %46 : vector<304xf32> to vector<304x1xf32>
    %cst_27 = arith.constant 3.125000e-02 : f32
    %48 = vector.broadcast %cst_27 : f32 to vector<304x1xf32>
    %49 = arith.mulf %47, %48 : vector<304x1xf32>
    %50 = arith.mulf %45, %45 : vector<304x128xf32>
    %cst_28 = arith.constant dense<0.000000e+00> : vector<304xf32>
    %51 = vector.multi_reduction <add>, %50, %cst_28 [1] : vector<304x128xf32> to vector<304xf32>
    %52 = vector.shape_cast %51 : vector<304xf32> to vector<304x1xf32>
    %cst_29 = arith.constant 3.125000e-02 : f32
    %53 = vector.broadcast %cst_29 : f32 to vector<304x1xf32>
    %54 = arith.mulf %52, %53 : vector<304x1xf32>
    %55 = arith.mulf %49, %49 : vector<304x1xf32>
    %56 = arith.subf %54, %55 : vector<304x1xf32>
    %cst_30 = arith.constant 0.000000e+00 : f32
    %57 = vector.broadcast %cst_30 : f32 to vector<304x1xf32>
    %58 = arith.maximumf %56, %57 : vector<304x1xf32>
    %59 = vector.broadcast %49 : vector<304x1xf32> to vector<304x128xf32>
    %60 = arith.subf %45, %59 : vector<304x128xf32>
    %cst_31 = arith.constant 1.000000e-03 : f32
    %61 = vector.broadcast %cst_31 : f32 to vector<304x1xf32>
    %62 = arith.addf %58, %61 : vector<304x1xf32>
    %63 = math.rsqrt %62 : vector<304x1xf32>
    %64 = vector.broadcast %63 : vector<304x1xf32> to vector<304x128xf32>
    %65 = arith.mulf %60, %64 : vector<304x128xf32>
    %66 = vector.broadcast %41 : vector<1x128xf32> to vector<304x128xf32>
    %67 = arith.mulf %65, %66 : vector<304x128xf32>
    %68 = vector.broadcast %43 : vector<1x128xf32> to vector<304x128xf32>
    %69 = arith.addf %67, %68 : vector<304x128xf32>
    %cst_32 = arith.constant 0.000000e+00 : f32
    %70 = vector.broadcast %cst_32 : f32 to vector<304x128xf32>
    %71 = arith.subf %70, %69 : vector<304x128xf32>
    %72 = math.exp %71 : vector<304x128xf32>
    %cst_33 = arith.constant 1.000000e+00 : f32
    %73 = vector.broadcast %cst_33 : f32 to vector<304x128xf32>
    %74 = arith.addf %73, %72 : vector<304x128xf32>
    %75 = tpu.reciprocal %74 {approx = true} : vector<304x128xf32> -> vector<304x128xf32>
    %76 = arith.mulf %69, %75 : vector<304x128xf32>
    %77 = arith.truncf %76 : vector<304x128xf32> to vector<304x128xbf16>
    %c0_34 = arith.constant 0 : index
    %c0_35 = arith.constant 0 : index
    %78 = vector.load %arg6[%c0_34, %c0_35] : memref<128x128xbf16, #tpu.memory_space<vmem>>, vector<128x128xbf16>
    %cst_36 = arith.constant dense<0.000000e+00> : vector<304x128xf32>
    %79 = tpu.matmul %77, %78, %cst_36 {dimension_numbers = #tpu.dot_dimension_numbers<[1], [0], [0], [1], [0, 0, 1, 1], [], []>} : vector<304x128xbf16>, vector<128x128xbf16>, vector<304x128xf32> -> vector<304x128xf32>
    %c0_37 = arith.constant 0 : index
    %c0_38 = arith.constant 0 : index
    %80 = vector.load %arg7[%c0_37, %c0_38] : memref<1x128xf32, #tpu.memory_space<vmem>>, vector<1x128xf32>
    %81 = vector.broadcast %80 : vector<1x128xf32> to vector<304x128xf32>
    %82 = arith.addf %79, %81 : vector<304x128xf32>
    %83 = math.tanh %82 : vector<304x128xf32>
    %84 = arith.truncf %83 : vector<304x128xf32> to vector<304x128xbf16>
    %c0_39 = arith.constant 0 : index
    %c0_40 = arith.constant 0 : index
    %85 = vector.load %arg8[%c0_39, %c0_40] : memref<304x128xbf16, #tpu.memory_space<vmem>>, vector<304x128xbf16>
    tpu.vector_store %arg8[%c0_39, %c0_40], %84 {strides = array<i32>} : memref<304x128xbf16, #tpu.memory_space<vmem>>, vector<304x128xbf16>,
    return
  }
  func.func @transform_0(%arg0: i32) -> (i32, i32) {
    %c0_i32 = arith.constant 0 : i32
    %c0_i32_0 = arith.constant 0 : i32
    return %arg0, %c0_i32 : i32, i32
  }
  func.func @transform_1(%arg0: i32) -> (i32, i32) {
    %c0_i32 = arith.constant 0 : i32
    %c0_i32_0 = arith.constant 0 : i32
    %c0_i32_1 = arith.constant 0 : i32
    return %c0_i32, %c0_i32_0 : i32, i32
  }
  func.func @transform_2(%arg0: i32) -> (i32, i32, i32) {
    %c0_i32 = arith.constant 0 : i32
    %c0_i32_0 = arith.constant 0 : i32
    %c0_i32_1 = arith.constant 0 : i32
    %c0_i32_2 = arith.constant 0 : i32
    return %c0_i32, %c0_i32_0, %c0_i32_1 : i32, i32, i32
  }
  func.func @transform_3(%arg0: i32) -> (i32, i32, i32) {
    %c0_i32 = arith.constant 0 : i32
    %c0_i32_0 = arith.constant 0 : i32
    %c0_i32_1 = arith.constant 0 : i32
    %c0_i32_2 = arith.constant 0 : i32
    return %c0_i32, %c0_i32_0, %c0_i32_1 : i32, i32, i32
  }
  func.func @transform_4(%arg0: i32) -> (i32, i32, i32) {
    %c0_i32 = arith.constant 0 : i32
    %c0_i32_0 = arith.constant 0 : i32
    %c0_i32_1 = arith.constant 0 : i32
    %c0_i32_2 = arith.constant 0 : i32
    return %c0_i32, %c0_i32_0, %c0_i32_1 : i32, i32, i32
  }
  func.func @transform_5(%arg0: i32) -> (i32, i32) {
    %c0_i32 = arith.constant 0 : i32
    %c0_i32_0 = arith.constant 0 : i32
    %c0_i32_1 = arith.constant 0 : i32
    return %c0_i32, %c0_i32_0 : i32, i32
  }
  func.func @transform_6(%arg0: i32) -> (i32, i32) {
    %c0_i32 = arith.constant 0 : i32
    %c0_i32_0 = arith.constant 0 : i32
    %c0_i32_1 = arith.constant 0 : i32
    return %c0_i32, %c0_i32_0 : i32, i32
  }
  func.func @transform_7(%arg0: i32) -> (i32, i32) {
    %c0_i32 = arith.constant 0 : i32
    %c0_i32_0 = arith.constant 0 : i32
    return %arg0, %c0_i32 : i32, i32
  }
}

</mosaic_0001>

<llo_original>
// kernel: tpu_custom_call.1
$region0: #{tpu_custom_call.1}
  #allocation0 [shape = 'u32[]', space=smem, size = 0x4, offset = 0x4, fixed_abs, tag = 'smem constant byte address 0x4 - core index']
  #allocation1 [shape = 'u32[144,128]{1,0:T(1,128)}', space=vmem, size = 0x12000, scoped, tag = 'internal scratch']
  %s0 = inlined_call_operand.hbm [shape: bf16[304,128], index: 0, kind: input, shape index: {}]
  %s1 = inlined_call_operand.hbm [shape: bf16[128,128], index: 1, kind: input, shape index: {}]
  %s2 = inlined_call_operand.hbm [shape: bf16[1,128,128], index: 2, kind: input, shape index: {}]
  %s3 = inlined_call_operand.vmem [shape: f32[2,1,128], index: 3, kind: input, shape index: {}]
  %s4 = inlined_call_operand.vmem [shape: f32[2,1,128], index: 4, kind: input, shape index: {}]
  %s5 = inlined_call_operand.hbm [shape: bf16[128,128], index: 5, kind: input, shape index: {}]
  %s6 = inlined_call_operand.vmem [shape: f32[1,128], index: 6, kind: input, shape index: {}]
  %s7 = inlined_call_operand.hbm [shape: bf16[304,128], index: 7, kind: output, shape index: {}]
  %s8 = sld [smem:[#allocation0]]
  $region54: #{tpu_custom_call.1} parent=0
    _
  %s10 = ssub.s32 1, %s8
  %s11 = scalar_select 0, %s10, %s8
  $region1: #{tpu_custom_call.1} parent=0
    #allocation2 [shape = 'u8[77824]{0}', space=vmem, size = 0x13000, scoped, tag = 'input window, operand 0, single buffered']
    #allocation3 [shape = 's32[1]{0}', space=sflag, size = 0x4, scoped, tag = 'scoped memory for tpu_custom_call.1']
    #allocation4 [shape = 's32[1]{0}', space=sflag, size = 0x4, scoped, tag = 'scoped memory for tpu_custom_call.1']
    #allocation5 [shape = 'u8[32768]{0}', space=vmem, size = 0x8000, scoped, tag = 'input window, operand 1, single buffered']
    #allocation6 [shape = 's32[1]{0}', space=sflag, size = 0x4, scoped, tag = 'scoped memory for tpu_custom_call.1']
    #allocation7 [shape = 'u8[32768]{0}', space=vmem, size = 0x8000, scoped, tag = 'input window, operand 2, single buffered']
    #allocation8 [shape = 'u8[32768]{0}', space=vmem, size = 0x8000, scoped, tag = 'input window, operand 5, single buffered']
    #allocation9 [shape = 's32[1]{0}', space=sflag, size = 0x4, scoped, tag = 'scoped memory for tpu_custom_call.1']
    #allocation10 [shape = 'u8[77824]{0}', space=vmem, size = 0x13000, scoped, tag = 'output window, operand 0, single buffered']
    %12 = vsyncpa [#allocation3], 0
    %13 = vsyncpa [#allocation6], 0
    %14 = vsyncpa [#allocation9], 0
    %15 = vsyncpa [#allocation4], 0
    // Predicated region
    $region2: #{tpu_custom_call.1} parent=1 // pred_check
      _
    $region3: #{tpu_custom_call.1} parent=1 // pred_check_branch
      %17 = sbr.rel (0) target = $region5
    $region4: #{tpu_custom_call.1} parent=1 // pred_region
      %s19 = ssub.s32 2432, 2432
      %20 = vsyncadd [#allocation3], %s19
      %s21 = sshll.u32 [#allocation2], 4
      %s22 = int_to_ptr.vmem [resolvable:$true] %s21
      %27 = dma.hbm_to_vmem [thread:$0]  %s0, 2432, %s22, [#allocation3], 64, 64, 4
    $region5: #{tpu_custom_call.1} parent=1 // pred_fallthru
      _
    // Predicated region
    $region6: #{tpu_custom_call.1} parent=1 // pred_check
      _
    $region7: #{tpu_custom_call.1} parent=1 // pred_check_branch
      %29 = sbr.rel (0) target = $region9
    $region8: #{tpu_custom_call.1} parent=1 // pred_region
      %s31 = ssub.s32 1024, 1024
      %32 = vsyncadd [#allocation6], %s31
      %s33 = sshll.u32 [#allocation5], 4
      %s34 = int_to_ptr.vmem [resolvable:$true] %s33
      %39 = dma.hbm_to_vmem [thread:$0]  %s1, 1024, %s34, [#allocation6], 64, 64, 4
    $region9: #{tpu_custom_call.1} parent=1 // pred_fallthru
      _
    // Predicated region
    $region10: #{tpu_custom_call.1} parent=1 // pred_check
      _
    $region11: #{tpu_custom_call.1} parent=1 // pred_check_branch
      %41 = sbr.rel (0) target = $region13
    $region12: #{tpu_custom_call.1} parent=1 // pred_region
      %s43 = ssub.s32 1024, 1024
      %44 = vsyncadd [#allocation6], %s43
      %s45 = sshll.u32 [#allocation7], 4
      %s46 = int_to_ptr.vmem [resolvable:$true] %s45
      %51 = dma.hbm_to_vmem [thread:$0]  %s2, 1024, %s46, [#allocation6], 64, 64, 4
    $region13: #{tpu_custom_call.1} parent=1 // pred_fallthru
      _
    // Predicated region
    $region14: #{tpu_custom_call.1} parent=1 // pred_check
      _
    $region15: #{tpu_custom_call.1} parent=1 // pred_check_branch
      %53 = sbr.rel (0) target = $region17
    $region16: #{tpu_custom_call.1} parent=1 // pred_region
      _
    $region17: #{tpu_custom_call.1} parent=1 // pred_fallthru
      _
    // Predicated region
    $region18: #{tpu_custom_call.1} parent=1 // pred_check
      _
    $region19: #{tpu_custom_call.1} parent=1 // pred_check_branch
      %55 = sbr.rel (0) target = $region21
    $region20: #{tpu_custom_call.1} parent=1 // pred_region
      _
    $region21: #{tpu_custom_call.1} parent=1 // pred_fallthru
      _
    // Predicated region
    $region22: #{tpu_custom_call.1} parent=1 // pred_check
      _
    $region23: #{tpu_custom_call.1} parent=1 // pred_check_branch
      %57 = sbr.rel (0) target = $region25
    $region24: #{tpu_custom_call.1} parent=1 // pred_region
      %s59 = ssub.s32 1024, 1024
      %60 = vsyncadd [#allocation9], %s59
      %s61 = sshll.u32 [#allocation8], 4
      %s62 = int_to_ptr.vmem [resolvable:$true] %s61
      %67 = dma.hbm_to_vmem [thread:$0]  %s5, 1024, %s62, [#allocation9], 64, 64, 4
    $region25: #{tpu_custom_call.1} parent=1 // pred_fallthru
      _
    // Predicated region
    $region26: #{tpu_custom_call.1} parent=1 // pred_check
      _
    $region27: #{tpu_custom_call.1} parent=1 // pred_check_branch
      %69 = sbr.rel (0) target = $region29
    $region28: #{tpu_custom_call.1} parent=1 // pred_region
      _
    $region29: #{tpu_custom_call.1} parent=1 // pred_fallthru
      _
    // Predicated region
    $region30: #{tpu_custom_call.1} parent=1 // pred_check
      _
    $region31: #{tpu_custom_call.1} parent=1 // pred_check_branch
      %71 = sbr.rel (0) target = $region33
    $region32: #{tpu_custom_call.1} parent=1 // pred_region
      %72 = dma.done [#allocation3], 2432
    $region33: #{tpu_custom_call.1} parent=1 // pred_fallthru
      _
    // Predicated region
    $region34: #{tpu_custom_call.1} parent=1 // pred_check
      _
    $region35: #{tpu_custom_call.1} parent=1 // pred_check_branch
      %74 = sbr.rel (0) target = $region37
    $region36: #{tpu_custom_call.1} parent=1 // pred_region
      %75 = dma.done [#allocation6], 1024
    $region37: #{tpu_custom_call.1} parent=1 // pred_fallthru
      _
    // Predicated region
    $region38: #{tpu_custom_call.1} parent=1 // pred_check
      _
    $region39: #{tpu_custom_call.1} parent=1 // pred_check_branch
      %77 = sbr.rel (0) target = $region41
    $region40: #{tpu_custom_call.1} parent=1 // pred_region
      %78 = dma.done [#allocation6], 1024
    $region41: #{tpu_custom_call.1} parent=1 // pred_fallthru
      _
    // Predicated region
    $region42: #{tpu_custom_call.1} parent=1 // pred_check
      _
    $region43: #{tpu_custom_call.1} parent=1 // pred_check_branch
      %80 = sbr.rel (0) target = $region45
    $region44: #{tpu_custom_call.1} parent=1 // pred_region
      %81 = dma.done [#allocation9], 1024
    $region45: #{tpu_custom_call.1} parent=1 // pred_fallthru
      _
    %v83 = vld [vmem:[#allocation2] sm:$0xf]
    %v84 = vld [vmem:[#allocation2 + $0x4] sm:$0xf]
    %v85 = vld [vmem:[#allocation2 + $0x8] sm:$0xf]
    %v86 = vld [vmem:[#allocation2 + $0xc] sm:$0xf]
    %v87 = vld [vmem:[#allocation2 + $0x10] sm:$0xf]
    %v88 = vld [vmem:[#allocation2 + $0x14] sm:$0xf]
    %v89 = vld [vmem:[#allocation2 + $0x18] sm:$0xf]
    %v90 = vld [vmem:[#allocation2 + $0x1c] sm:$0xf]
    %v91 = vld [vmem:[#allocation2 + $0x20] sm:$0xf]
    %v92 = vld [vmem:[#allocation2 + $0x24] sm:$0xf]
    %v93 = vld [vmem:[#allocation2 + $0x28] sm:$0xf]
    %v94 = vld [vmem:[#allocation2 + $0x2c] sm:$0xf]
    %v95 = vld [vmem:[#allocation2 + $0x30] sm:$0xf]
    %v96 = vld [vmem:[#allocation2 + $0x34] sm:$0xf]
    %v97 = vld [vmem:[#allocation2 + $0x38] sm:$0xf]
    %v98 = vld [vmem:[#allocation2 + $0x3c] sm:$0xf]
    %v99 = vld [vmem:[#allocation2 + $0x40] sm:$0xf]
    %v100 = vld [vmem:[#allocation2 + $0x44] sm:$0xf]
    %v101 = vld [vmem:[#allocation2 + $0x48] sm:$0xf]
    %v102 = vld [vmem:[#allocation2 + $0x4c] sm:$0xf]
    %v103 = vld [vmem:[#allocation2 + $0x50] sm:$0xf]
    %v104 = vld [vmem:[#allocation2 + $0x54] sm:$0xf]
    %v105 = vld [vmem:[#allocation2 + $0x58] sm:$0xf]
    %v106 = vld [vmem:[#allocation2 + $0x5c] sm:$0xf]
    %v107 = vld [vmem:[#allocation2 + $0x60] sm:$0xf]
    %v108 = vld [vmem:[#allocation2 + $0x64] sm:$0xf]
    %v109 = vld [vmem:[#allocation2 + $0x68] sm:$0xf]
    %v110 = vld [vmem:[#allocation2 + $0x6c] sm:$0xf]
    %v111 = vld [vmem:[#allocation2 + $0x70] sm:$0xf]
    %v112 = vld [vmem:[#allocation2 + $0x74] sm:$0xf]
    %v113 = vld [vmem:[#allocation2 + $0x78] sm:$0xf]
    %v114 = vld [vmem:[#allocation2 + $0x7c] sm:$0xf]
    %v115 = vld [vmem:[#allocation2 + $0x80] sm:$0xf]
    %v116 = vld [vmem:[#allocation2 + $0x84] sm:$0xf]
    %v117 = vld [vmem:[#allocation2 + $0x88] sm:$0xf]
    %v118 = vld [vmem:[#allocation2 + $0x8c] sm:$0xf]
    %v119 = vld [vmem:[#allocation2 + $0x90] sm:$0xf]
    %v120 = vld [vmem:[#allocation2 + $0x94] sm:$0xf]
    %v121 = vld [vmem:[#allocation5] sm:$0xf]
    %v122 = vld [vmem:[#allocation5 + $0x4] sm:$0xf]
    %v123 = vld [vmem:[#allocation5 + $0x8] sm:$0xf]
    %v124 = vld [vmem:[#allocation5 + $0xc] sm:$0xf]
    %v125 = vld [vmem:[#allocation5 + $0x10] sm:$0xf]
    %v126 = vld [vmem:[#allocation5 + $0x14] sm:$0xf]
    %v127 = vld [vmem:[#allocation5 + $0x18] sm:$0xf]
    %v128 = vld [vmem:[#allocation5 + $0x1c] sm:$0xf]
    %v129 = vld [vmem:[#allocation5 + $0x20] sm:$0xf]
    %v130 = vld [vmem:[#allocation5 + $0x24] sm:$0xf]
    %v131 = vld [vmem:[#allocation5 + $0x28] sm:$0xf]
    %v132 = vld [vmem:[#allocation5 + $0x2c] sm:$0xf]
    %v133 = vld [vmem:[#allocation5 + $0x30] sm:$0xf]
    %v134 = vld [vmem:[#allocation5 + $0x34] sm:$0xf]
    %v135 = vld [vmem:[#allocation5 + $0x38] sm:$0xf]
    %v136 = vld [vmem:[#allocation5 + $0x3c] sm:$0xf]
    %v137 = vld [vmem:[%s3] sm:$0x1]
    %v138 = vld [vmem:[%s4] sm:$0x1]
    %v177 = vunpack.c.l.b16 %v83
    %v178 = vunpack.c.l.b16 %v84
    %v179 = vunpack.c.l.b16 %v85
    %v180 = vunpack.c.l.b16 %v86
    %v181 = vunpack.c.l.b16 %v87
    %v182 = vunpack.c.l.b16 %v88
    %v183 = vunpack.c.l.b16 %v89
    %v184 = vunpack.c.l.b16 %v90
    %v185 = vunpack.c.l.b16 %v91
    %v186 = vunpack.c.l.b16 %v92
    %v187 = vunpack.c.l.b16 %v93
    %v188 = vunpack.c.l.b16 %v94
    %v189 = vunpack.c.l.b16 %v95
    %v190 = vunpack.c.l.b16 %v96
    %v191 = vunpack.c.l.b16 %v97
    %v192 = vunpack.c.l.b16 %v98
    %v193 = vunpack.c.l.b16 %v99
    %v194 = vunpack.c.l.b16 %v100
    %v195 = vunpack.c.l.b16 %v101
    %v196 = vunpack.c.l.b16 %v102
    %v197 = vunpack.c.l.b16 %v103
    %v198 = vunpack.c.l.b16 %v104
    %v199 = vunpack.c.l.b16 %v105
    %v200 = vunpack.c.l.b16 %v106
    %v201 = vunpack.c.l.b16 %v107
    %v202 = vunpack.c.l.b16 %v108
    %v203 = vunpack.c.l.b16 %v109
    %v204 = vunpack.c.l.b16 %v110
    %v205 = vunpack.c.l.b16 %v111
    %v206 = vunpack.c.l.b16 %v112
    %v207 = vunpack.c.l.b16 %v113
    %v208 = vunpack.c.l.b16 %v114
    %v209 = vunpack.c.l.b16 %v115
    %v210 = vunpack.c.l.b16 %v116
    %v211 = vunpack.c.l.b16 %v117
    %v212 = vunpack.c.l.b16 %v118
    %v213 = vunpack.c.l.b16 %v119
    %v214 = vunpack.c.l.b16 %v120
    %v215 = vpack.c.b16 %v178, %v177
    %v216 = vpack.c.b16 %v180, %v179
    %v217 = vpack.c.b16 %v182, %v181
    %v218 = vpack.c.b16 %v184, %v183
    %v219 = vpack.c.b16 %v186, %v185
    %v220 = vpack.c.b16 %v188, %v187
    %v221 = vpack.c.b16 %v190, %v189
    %v222 = vpack.c.b16 %v192, %v191
    %v223 = vpack.c.b16 %v194, %v193
    %v224 = vpack.c.b16 %v196, %v195
    %v225 = vpack.c.b16 %v198, %v197
    %v226 = vpack.c.b16 %v200, %v199
    %v227 = vpack.c.b16 %v202, %v201
    %v228 = vpack.c.b16 %v204, %v203
    %v229 = vpack.c.b16 %v206, %v205
    %v230 = vpack.c.b16 %v208, %v207
    %v231 = vpack.c.b16 %v210, %v209
    %v232 = vpack.c.b16 %v212, %v211
    %v233 = vpack.c.b16 %v214, %v213
    %v269 = vunpack.c.l.b16 %v121
    %v270 = vunpack.c.l.b16 %v122
    %v271 = vunpack.c.l.b16 %v123
    %v272 = vunpack.c.l.b16 %v124
    %v273 = vunpack.c.l.b16 %v125
    %v274 = vunpack.c.l.b16 %v126
    %v275 = vunpack.c.l.b16 %v127
    %v276 = vunpack.c.l.b16 %v128
    %v277 = vunpack.c.l.b16 %v129
    %v278 = vunpack.c.l.b16 %v130
    %v279 = vunpack.c.l.b16 %v131
    %v280 = vunpack.c.l.b16 %v132
    %v281 = vunpack.c.l.b16 %v133
    %v282 = vunpack.c.l.b16 %v134
    %v283 = vunpack.c.l.b16 %v135
    %v284 = vunpack.c.l.b16 %v136
    %v285 = vpack.c.b16 %v270, %v269
    %v286 = vpack.c.b16 %v272, %v271
    %v287 = vpack.c.b16 %v274, %v273
    %v288 = vpack.c.b16 %v276, %v275
    %v289 = vpack.c.b16 %v278, %v277
    %v290 = vpack.c.b16 %v280, %v279
    %v291 = vpack.c.b16 %v282, %v281
    %v292 = vpack.c.b16 %v284, %v283
    %301 = vmatprep.subr.bf16.mxu0 0
    %302 = vmatpush1.bf16.msra.mxu0 %v292
    %303 = vmatprep.subr.bf16.mxu0 0
    %304 = vmatpush1.bf16.msra.mxu0 %v291
    %305 = vmatprep.subr.bf16.mxu0 0
    %306 = vmatpush1.bf16.msra.mxu0 %v290
    %307 = vmatprep.subr.bf16.mxu0 0
    %308 = vmatpush1.bf16.msra.mxu0 %v289
    %309 = vmatprep.subr.bf16.mxu0 0
    %310 = vmatpush1.bf16.msra.mxu0 %v288
    %311 = vmatprep.subr.bf16.mxu0 0
    %312 = vmatpush1.bf16.msra.mxu0 %v287
    %313 = vmatprep.subr.bf16.mxu0 0
    %314 = vmatpush1.bf16.msra.mxu0 %v286
    %315 = vmatprep.subr.bf16.mxu0 0
    %316 = vmatpush1.bf16.msra.mxu0 %v285
    %317 = vmatprep.subr.bf16.mxu0 0
    %318 = vmatpush2.bf16.msra.mxu0 0
    %319 = vmatprep.subr.bf16.mxu0 0
    %320 = vmatpush2.bf16.msra.mxu0 0
    %321 = vmatprep.subr.bf16.mxu0 0
    %322 = vmatpush2.bf16.msra.mxu0 0
    %323 = vmatprep.subr.bf16.mxu0 0
    %324 = vmatpush2.bf16.msra.mxu0 0
    %325 = vmatprep.subr.bf16.mxu0 0
    %326 = vmatpush2.bf16.msra.mxu0 0
    %327 = vmatprep.subr.bf16.mxu0 0
    %328 = vmatpush2.bf16.msra.mxu0 0
    %329 = vmatprep.subr.bf16.mxu0 0
    %330 = vmatpush2.bf16.msra.mxu0 0
    %331 = vmatprep.subr.bf16.mxu0 0
    %332 = vmatpush2.bf16.msra.mxu0 0
    %333 = vmatprep.mubr.bf16.mxu0 0
    %334 = vmatmul.mubr.bf16.gmra.mxu0 %v215
    %v335 = vpop.f32.mrf.mxu0
    %v336 = vadd.f32 0.0, %v335
    %v337 = vpop.f32.mrf.mxu0
    %v338 = vpop.f32.mrf.mxu0
    %v339 = vadd.f32 0.0, %v338
    %v340 = vpop.f32.mrf.mxu0
    %341 = vmatprep.mubr.bf16.mxu0 0
    %342 = vmatmul.mubr.bf16.gmra.mxu0 %v216
    %v343 = vpop.f32.mrf.mxu0
    %v344 = vadd.f32 0.0, %v343
    %v345 = vpop.f32.mrf.mxu0
    %v346 = vpop.f32.mrf.mxu0
    %v347 = vadd.f32 0.0, %v346
    %v348 = vpop.f32.mrf.mxu0
    %349 = vmatprep.mubr.bf16.mxu0 0
    %350 = vmatmul.mubr.bf16.gmra.mxu0 %v217
    %v351 = vpop.f32.mrf.mxu0
    %v352 = vadd.f32 0.0, %v351
    %v353 = vpop.f32.mrf.mxu0
    %v354 = vpop.f32.mrf.mxu0
    %v355 = vadd.f32 0.0, %v354
    %v356 = vpop.f32.mrf.mxu0
    %357 = vmatprep.mubr.bf16.mxu0 0
    %358 = vmatmul.mubr.bf16.gmra.mxu0 %v218
    %v359 = vpop.f32.mrf.mxu0
    %v360 = vadd.f32 0.0, %v359
    %v361 = vpop.f32.mrf.mxu0
    %v362 = vpop.f32.mrf.mxu0
    %v363 = vadd.f32 0.0, %v362
    %v364 = vpop.f32.mrf.mxu0
    %365 = vmatprep.mubr.bf16.mxu0 0
    %366 = vmatmul.mubr.bf16.gmra.mxu0 %v219
    %v367 = vpop.f32.mrf.mxu0
    %v368 = vadd.f32 0.0, %v367
    %v369 = vpop.f32.mrf.mxu0
    %v370 = vpop.f32.mrf.mxu0
    %v371 = vadd.f32 0.0, %v370
    %v372 = vpop.f32.mrf.mxu0
    %373 = vmatprep.mubr.bf16.mxu0 0
    %374 = vmatmul.mubr.bf16.gmra.mxu0 %v220
    %v375 = vpop.f32.mrf.mxu0
    %v376 = vadd.f32 0.0, %v375
    %v377 = vpop.f32.mrf.mxu0
    %v378 = vpop.f32.mrf.mxu0
    %v379 = vadd.f32 0.0, %v378
    %v380 = vpop.f32.mrf.mxu0
    %381 = vmatprep.mubr.bf16.mxu0 0
    %382 = vmatmul.mubr.bf16.gmra.mxu0 %v221
    %v383 = vpop.f32.mrf.mxu0
    %v384 = vadd.f32 0.0, %v383
    %v385 = vpop.f32.mrf.mxu0
    %v386 = vpop.f32.mrf.mxu0
    %v387 = vadd.f32 0.0, %v386
    %v388 = vpop.f32.mrf.mxu0
    %389 = vmatprep.mubr.bf16.mxu0 0
    %390 = vmatmul.mubr.bf16.gmra.mxu0 %v222
    %v391 = vpop.f32.mrf.mxu0
    %v392 = vadd.f32 0.0, %v391
    %v393 = vpop.f32.mrf.mxu0
    %v394 = vpop.f32.mrf.mxu0
    %v395 = vadd.f32 0.0, %v394
    %v396 = vpop.f32.mrf.mxu0
    %397 = vmatprep.mubr.bf16.mxu0 0
    %398 = vmatmul.mubr.bf16.gmra.mxu0 %v223
    %v399 = vpop.f32.mrf.mxu0
    %v400 = vadd.f32 0.0, %v399
    %v401 = vpop.f32.mrf.mxu0
    %v402 = vpop.f32.mrf.mxu0
    %v403 = vadd.f32 0.0, %v402
    %v404 = vpop.f32.mrf.mxu0
    %405 = vmatprep.mubr.bf16.mxu0 0
    %406 = vmatmul.mubr.bf16.gmra.mxu0 %v224
    %v407 = vpop.f32.mrf.mxu0
    %v408 = vadd.f32 0.0, %v407
    %v409 = vpop.f32.mrf.mxu0
    %v410 = vpop.f32.mrf.mxu0
    %v411 = vadd.f32 0.0, %v410
    %v412 = vpop.f32.mrf.mxu0
    %413 = vmatprep.mubr.bf16.mxu0 0
    %414 = vmatmul.mubr.bf16.gmra.mxu0 %v225
    %v415 = vpop.f32.mrf.mxu0
    %v416 = vadd.f32 0.0, %v415
    %v417 = vpop.f32.mrf.mxu0
    %v418 = vpop.f32.mrf.mxu0
    %v419 = vadd.f32 0.0, %v418
    %v420 = vpop.f32.mrf.mxu0
    %421 = vmatprep.mubr.bf16.mxu0 0
    %422 = vmatmul.mubr.bf16.gmra.mxu0 %v226
    %v423 = vpop.f32.mrf.mxu0
    %v424 = vadd.f32 0.0, %v423
    %v425 = vpop.f32.mrf.mxu0
    %v426 = vpop.f32.mrf.mxu0
    %v427 = vadd.f32 0.0, %v426
    %v428 = vpop.f32.mrf.mxu0
    %429 = vmatprep.mubr.bf16.mxu0 0
    %430 = vmatmul.mubr.bf16.gmra.mxu0 %v227
    %v431 = vpop.f32.mrf.mxu0
    %v432 = vadd.f32 0.0, %v431
    %v433 = vpop.f32.mrf.mxu0
    %v434 = vpop.f32.mrf.mxu0
    %v435 = vadd.f32 0.0, %v434
    %v436 = vpop.f32.mrf.mxu0
    %437 = vmatprep.mubr.bf16.mxu0 0
    %438 = vmatmul.mubr.bf16.gmra.mxu0 %v228
    %v439 = vpop.f32.mrf.mxu0
    %v440 = vadd.f32 0.0, %v439
    %v441 = vpop.f32.mrf.mxu0
    %v442 = vpop.f32.mrf.mxu0
    %v443 = vadd.f32 0.0, %v442
    %v444 = vpop.f32.mrf.mxu0
    %445 = vmatprep.mubr.bf16.mxu0 0
    %446 = vmatmul.mubr.bf16.gmra.mxu0 %v229
    %v447 = vpop.f32.mrf.mxu0
    %v448 = vadd.f32 0.0, %v447
    %v449 = vpop.f32.mrf.mxu0
    %v450 = vpop.f32.mrf.mxu0
    %v451 = vadd.f32 0.0, %v450
    %v452 = vpop.f32.mrf.mxu0
    %453 = vmatprep.mubr.bf16.mxu0 0
    %454 = vmatmul.mubr.bf16.gmra.mxu0 %v230
    %v455 = vpop.f32.mrf.mxu0
    %v456 = vadd.f32 0.0, %v455
    %v457 = vpop.f32.mrf.mxu0
    %v458 = vpop.f32.mrf.mxu0
    %v459 = vadd.f32 0.0, %v458
    %v460 = vpop.f32.mrf.mxu0
    %461 = vmatprep.mubr.bf16.mxu0 0
    %462 = vmatmul.mubr.bf16.gmra.mxu0 %v231
    %v463 = vpop.f32.mrf.mxu0
    %v464 = vadd.f32 0.0, %v463
    %v465 = vpop.f32.mrf.mxu0
    %v466 = vpop.f32.mrf.mxu0
    %v467 = vadd.f32 0.0, %v466
    %v468 = vpop.f32.mrf.mxu0
    %469 = vmatprep.mubr.bf16.mxu0 0
    %470 = vmatmul.mubr.bf16.gmra.mxu0 %v232
    %v471 = vpop.f32.mrf.mxu0
    %v472 = vadd.f32 0.0, %v471
    %v473 = vpop.f32.mrf.mxu0
    %v474 = vpop.f32.mrf.mxu0
    %v475 = vadd.f32 0.0, %v474
    %v476 = vpop.f32.mrf.mxu0
    %477 = vmatprep.mubr.bf16.mxu0 0
    %478 = vmatmul.mubr.bf16.gmra.mxu0 %v233
    %v479 = vpop.f32.mrf.mxu0
    %v480 = vadd.f32 0.0, %v479
    %v481 = vpop.f32.mrf.mxu0
    %v482 = vpop.f32.mrf.mxu0
    %v483 = vadd.f32 0.0, %v482
    %v484 = vpop.f32.mrf.mxu0
    %485 = vdwg.mxu0
    %486 = vadd.xlane.f32.xlu0 %v336
    %v487 = vpop.xlane.xlu0 %486
    %488 = vadd.xlane.f32.xlu0 %v339
    %v489 = vpop.xlane.xlu0 %488
    %490 = vadd.xlane.f32.xlu0 %v344
    %v491 = vpop.xlane.xlu0 %490
    %492 = vadd.xlane.f32.xlu0 %v347
    %v493 = vpop.xlane.xlu0 %492
    %494 = vadd.xlane.f32.xlu0 %v352
    %v495 = vpop.xlane.xlu0 %494
    %496 = vadd.xlane.f32.xlu0 %v355
    %v497 = vpop.xlane.xlu0 %496
    %498 = vadd.xlane.f32.xlu0 %v360
    %v499 = vpop.xlane.xlu0 %498
    %500 = vadd.xlane.f32.xlu0 %v363
    %v501 = vpop.xlane.xlu0 %500
    %502 = vadd.xlane.f32.xlu0 %v368
    %v503 = vpop.xlane.xlu0 %502
    %504 = vadd.xlane.f32.xlu0 %v371
    %v505 = vpop.xlane.xlu0 %504
    %506 = vadd.xlane.f32.xlu0 %v376
    %v507 = vpop.xlane.xlu0 %506
    %508 = vadd.xlane.f32.xlu0 %v379
    %v509 = vpop.xlane.xlu0 %508
    %510 = vadd.xlane.f32.xlu0 %v384
    %v511 = vpop.xlane.xlu0 %510
    %512 = vadd.xlane.f32.xlu0 %v387
    %v513 = vpop.xlane.xlu0 %512
    %514 = vadd.xlane.f32.xlu0 %v392
    %v515 = vpop.xlane.xlu0 %514
    %516 = vadd.xlane.f32.xlu0 %v395
    %v517 = vpop.xlane.xlu0 %516
    %518 = vadd.xlane.f32.xlu0 %v400
    %v519 = vpop.xlane.xlu0 %518
    %520 = vadd.xlane.f32.xlu0 %v403
    %v521 = vpop.xlane.xlu0 %520
    %522 = vadd.xlane.f32.xlu0 %v408
    %v523 = vpop.xlane.xlu0 %522
    %524 = vadd.xlane.f32.xlu0 %v411
    %v525 = vpop.xlane.xlu0 %524
    %526 = vadd.xlane.f32.xlu0 %v416
    %v527 = vpop.xlane.xlu0 %526
    %528 = vadd.xlane.f32.xlu0 %v419
    %v529 = vpop.xlane.xlu0 %528
    %530 = vadd.xlane.f32.xlu0 %v424
    %v531 = vpop.xlane.xlu0 %530
    %532 = vadd.xlane.f32.xlu0 %v427
    %v533 = vpop.xlane.xlu0 %532
    %534 = vadd.xlane.f32.xlu0 %v432
    %v535 = vpop.xlane.xlu0 %534
    %536 = vadd.xlane.f32.xlu0 %v435
    %v537 = vpop.xlane.xlu0 %536
    %538 = vadd.xlane.f32.xlu0 %v440
    %v539 = vpop.xlane.xlu0 %538
    %540 = vadd.xlane.f32.xlu0 %v443
    %v541 = vpop.xlane.xlu0 %540
    %542 = vadd.xlane.f32.xlu0 %v448
    %v543 = vpop.xlane.xlu0 %542
    %544 = vadd.xlane.f32.xlu0 %v451
    %v545 = vpop.xlane.xlu0 %544
    %546 = vadd.xlane.f32.xlu0 %v456
    %v547 = vpop.xlane.xlu0 %546
    %548 = vadd.xlane.f32.xlu0 %v459
    %v549 = vpop.xlane.xlu0 %548
    %550 = vadd.xlane.f32.xlu0 %v464
    %v551 = vpop.xlane.xlu0 %550
    %552 = vadd.xlane.f32.xlu0 %v467
    %v553 = vpop.xlane.xlu0 %552
    %554 = vadd.xlane.f32.xlu0 %v472
    %v555 = vpop.xlane.xlu0 %554
    %556 = vadd.xlane.f32.xlu0 %v475
    %v557 = vpop.xlane.xlu0 %556
    %558 = vadd.xlane.f32.xlu0 %v480
    %v559 = vpop.xlane.xlu0 %558
    %560 = vadd.xlane.f32.xlu0 %v483
    %v561 = vpop.xlane.xlu0 %560
    %v562 = vmul.f32 %v487, 0.03125
    %v563 = vmul.f32 %v489, 0.03125
    %v564 = vmul.f32 %v491, 0.03125
    %v565 = vmul.f32 %v493, 0.03125
    %v566 = vmul.f32 %v495, 0.03125
    %v567 = vmul.f32 %v497, 0.03125
    %v568 = vmul.f32 %v499, 0.03125
    %v569 = vmul.f32 %v501, 0.03125
    %v570 = vmul.f32 %v503, 0.03125
    %v571 = vmul.f32 %v505, 0.03125
    %v572 = vmul.f32 %v507, 0.03125
    %v573 = vmul.f32 %v509, 0.03125
    %v574 = vmul.f32 %v511, 0.03125
    %v575 = vmul.f32 %v513, 0.03125
    %v576 = vmul.f32 %v515, 0.03125
    %v577 = vmul.f32 %v517, 0.03125
    %v578 = vmul.f32 %v519, 0.03125
    %v579 = vmul.f32 %v521, 0.03125
    %v580 = vmul.f32 %v523, 0.03125
    %v581 = vmul.f32 %v525, 0.03125
    %v582 = vmul.f32 %v527, 0.03125
    %v583 = vmul.f32 %v529, 0.03125
    %v584 = vmul.f32 %v531, 0.03125
    %v585 = vmul.f32 %v533, 0.03125
    %v586 = vmul.f32 %v535, 0.03125
    %v587 = vmul.f32 %v537, 0.03125
    %v588 = vmul.f32 %v539, 0.03125
    %v589 = vmul.f32 %v541, 0.03125
    %v590 = vmul.f32 %v543, 0.03125
    %v591 = vmul.f32 %v545, 0.03125
    %v592 = vmul.f32 %v547, 0.03125
    %v593 = vmul.f32 %v549, 0.03125
    %v594 = vmul.f32 %v551, 0.03125
    %v595 = vmul.f32 %v553, 0.03125
    %v596 = vmul.f32 %v555, 0.03125
    %v597 = vmul.f32 %v557, 0.03125
    %v598 = vmul.f32 %v559, 0.03125
    %v599 = vmul.f32 %v561, 0.03125
    %v600 = vmul.f32 %v336, %v336
    %v601 = vmul.f32 %v339, %v339
    %v602 = vmul.f32 %v344, %v344
    %v603 = vmul.f32 %v347, %v347
    %v604 = vmul.f32 %v352, %v352
    %v605 = vmul.f32 %v355, %v355
    %v606 = vmul.f32 %v360, %v360
    %v607 = vmul.f32 %v363, %v363
    %v608 = vmul.f32 %v368, %v368
    %v609 = vmul.f32 %v371, %v371
    %v610 = vmul.f32 %v376, %v376
    %v611 = vmul.f32 %v379, %v379
    %v612 = vmul.f32 %v384, %v384
    %v613 = vmul.f32 %v387, %v387
    %v614 = vmul.f32 %v392, %v392
    %v615 = vmul.f32 %v395, %v395
    %v616 = vmul.f32 %v400, %v400
    %v617 = vmul.f32 %v403, %v403
    %v618 = vmul.f32 %v408, %v408
    %v619 = vmul.f32 %v411, %v411
    %v620 = vmul.f32 %v416, %v416
    %v621 = vmul.f32 %v419, %v419
    %v622 = vmul.f32 %v424, %v424
    %v623 = vmul.f32 %v427, %v427
    %v624 = vmul.f32 %v432, %v432
    %v625 = vmul.f32 %v435, %v435
    %v626 = vmul.f32 %v440, %v440
    %v627 = vmul.f32 %v443, %v443
    %v628 = vmul.f32 %v448, %v448
    %v629 = vmul.f32 %v451, %v451
    %v630 = vmul.f32 %v456, %v456
    %v631 = vmul.f32 %v459, %v459
    %v632 = vmul.f32 %v464, %v464
    %v633 = vmul.f32 %v467, %v467
    %v634 = vmul.f32 %v472, %v472
    %v635 = vmul.f32 %v475, %v475
    %v636 = vmul.f32 %v480, %v480
    %v637 = vmul.f32 %v483, %v483
    %638 = vadd.xlane.f32.xlu0 %v600
    %v639 = vpop.xlane.xlu0 %638
    %640 = vadd.xlane.f32.xlu0 %v601
    %v641 = vpop.xlane.xlu0 %640
    %642 = vadd.xlane.f32.xlu0 %v602
    %v643 = vpop.xlane.xlu0 %642
    %644 = vadd.xlane.f32.xlu0 %v603
    %v645 = vpop.xlane.xlu0 %644
    %646 = vadd.xlane.f32.xlu0 %v604
    %v647 = vpop.xlane.xlu0 %646
    %648 = vadd.xlane.f32.xlu0 %v605
    %v649 = vpop.xlane.xlu0 %648
    %650 = vadd.xlane.f32.xlu0 %v606
    %v651 = vpop.xlane.xlu0 %650
    %652 = vadd.xlane.f32.xlu0 %v607
    %v653 = vpop.xlane.xlu0 %652
    %654 = vadd.xlane.f32.xlu0 %v608
    %v655 = vpop.xlane.xlu0 %654
    %656 = vadd.xlane.f32.xlu0 %v609
    %v657 = vpop.xlane.xlu0 %656
    %658 = vadd.xlane.f32.xlu0 %v610
    %v659 = vpop.xlane.xlu0 %658
    %660 = vadd.xlane.f32.xlu0 %v611
    %v661 = vpop.xlane.xlu0 %660
    %662 = vadd.xlane.f32.xlu0 %v612
    %v663 = vpop.xlane.xlu0 %662
    %664 = vadd.xlane.f32.xlu0 %v613
    %v665 = vpop.xlane.xlu0 %664
    %666 = vadd.xlane.f32.xlu0 %v614
    %v667 = vpop.xlane.xlu0 %666
    %668 = vadd.xlane.f32.xlu0 %v615
    %v669 = vpop.xlane.xlu0 %668
    %670 = vadd.xlane.f32.xlu0 %v616
    %v671 = vpop.xlane.xlu0 %670
    %672 = vadd.xlane.f32.xlu0 %v617
    %v673 = vpop.xlane.xlu0 %672
    %674 = vadd.xlane.f32.xlu0 %v618
    %v675 = vpop.xlane.xlu0 %674
    %676 = vadd.xlane.f32.xlu0 %v619
    %v677 = vpop.xlane.xlu0 %676
    %678 = vadd.xlane.f32.xlu0 %v620
    %v679 = vpop.xlane.xlu0 %678
    %680 = vadd.xlane.f32.xlu0 %v621
    %v681 = vpop.xlane.xlu0 %680
    %682 = vadd.xlane.f32.xlu0 %v622
    %v683 = vpop.xlane.xlu0 %682
    %684 = vadd.xlane.f32.xlu0 %v623
    %v685 = vpop.xlane.xlu0 %684
    %686 = vadd.xlane.f32.xlu0 %v624
    %v687 = vpop.xlane.xlu0 %686
    %688 = vadd.xlane.f32.xlu0 %v625
    %v689 = vpop.xlane.xlu0 %688
    %690 = vadd.xlane.f32.xlu0 %v626
    %v691 = vpop.xlane.xlu0 %690
    %692 = vadd.xlane.f32.xlu0 %v627
    %v693 = vpop.xlane.xlu0 %692
    %694 = vadd.xlane.f32.xlu0 %v628
    %v695 = vpop.xlane.xlu0 %694
    %696 = vadd.xlane.f32.xlu0 %v629
    %v697 = vpop.xlane.xlu0 %696
    %698 = vadd.xlane.f32.xlu0 %v630
    %v699 = vpop.xlane.xlu0 %698
    %700 = vadd.xlane.f32.xlu0 %v631
    %v701 = vpop.xlane.xlu0 %700
    %702 = vadd.xlane.f32.xlu0 %v632
    %v703 = vpop.xlane.xlu0 %702
    %704 = vadd.xlane.f32.xlu0 %v633
    %v705 = vpop.xlane.xlu0 %704
    %706 = vadd.xlane.f32.xlu0 %v634
    %v707 = vpop.xlane.xlu0 %706
    %708 = vadd.xlane.f32.xlu0 %v635
    %v709 = vpop.xlane.xlu0 %708
    %710 = vadd.xlane.f32.xlu0 %v636
    %v711 = vpop.xlane.xlu0 %710
    %712 = vadd.xlane.f32.xlu0 %v637
    %v713 = vpop.xlane.xlu0 %712
    %v714 = vmul.f32 %v639, 0.03125
    %v715 = vmul.f32 %v641, 0.03125
    %v716 = vmul.f32 %v643, 0.03125
    %v717 = vmul.f32 %v645, 0.03125
    %v718 = vmul.f32 %v647, 0.03125
    %v719 = vmul.f32 %v649, 0.03125
    %v720 = vmul.f32 %v651, 0.03125
    %v721 = vmul.f32 %v653, 0.03125
    %v722 = vmul.f32 %v655, 0.03125
    %v723 = vmul.f32 %v657, 0.03125
    %v724 = vmul.f32 %v659, 0.03125
    %v725 = vmul.f32 %v661, 0.03125
    %v726 = vmul.f32 %v663, 0.03125
    %v727 = vmul.f32 %v665, 0.03125
    %v728 = vmul.f32 %v667, 0.03125
    %v729 = vmul.f32 %v669, 0.03125
    %v730 = vmul.f32 %v671, 0.03125
    %v731 = vmul.f32 %v673, 0.03125
    %v732 = vmul.f32 %v675, 0.03125
    %v733 = vmul.f32 %v677, 0.03125
    %v734 = vmul.f32 %v679, 0.03125
    %v735 = vmul.f32 %v681, 0.03125
    %v736 = vmul.f32 %v683, 0.03125
    %v737 = vmul.f32 %v685, 0.03125
    %v738 = vmul.f32 %v687, 0.03125
    %v739 = vmul.f32 %v689, 0.03125
    %v740 = vmul.f32 %v691, 0.03125
    %v741 = vmul.f32 %v693, 0.03125
    %v742 = vmul.f32 %v695, 0.03125
    %v743 = vmul.f32 %v697, 0.03125
    %v744 = vmul.f32 %v699, 0.03125
    %v745 = vmul.f32 %v701, 0.03125
    %v746 = vmul.f32 %v703, 0.03125
    %v747 = vmul.f32 %v705, 0.03125
    %v748 = vmul.f32 %v707, 0.03125
    %v749 = vmul.f32 %v709, 0.03125
    %v750 = vmul.f32 %v711, 0.03125
    %v751 = vmul.f32 %v713, 0.03125
    %v752 = vmul.f32 %v562, %v562
    %v753 = vmul.f32 %v563, %v563
    %v754 = vmul.f32 %v564, %v564
    %v755 = vmul.f32 %v565, %v565
    %v756 = vmul.f32 %v566, %v566
    %v757 = vmul.f32 %v567, %v567
    %v758 = vmul.f32 %v568, %v568
    %v759 = vmul.f32 %v569, %v569
    %v760 = vmul.f32 %v570, %v570
    %v761 = vmul.f32 %v571, %v571
    %v762 = vmul.f32 %v572, %v572
    %v763 = vmul.f32 %v573, %v573
    %v764 = vmul.f32 %v574, %v574
    %v765 = vmul.f32 %v575, %v575
    %v766 = vmul.f32 %v576, %v576
    %v767 = vmul.f32 %v577, %v577
    %v768 = vmul.f32 %v578, %v578
    %v769 = vmul.f32 %v579, %v579
    %v770 = vmul.f32 %v580, %v580
    %v771 = vmul.f32 %v581, %v581
    %v772 = vmul.f32 %v582, %v582
    %v773 = vmul.f32 %v583, %v583
    %v774 = vmul.f32 %v584, %v584
    %v775 = vmul.f32 %v585, %v585
    %v776 = vmul.f32 %v586, %v586
    %v777 = vmul.f32 %v587, %v587
    %v778 = vmul.f32 %v588, %v588
    %v779 = vmul.f32 %v589, %v589
    %v780 = vmul.f32 %v590, %v590
    %v781 = vmul.f32 %v591, %v591
    %v782 = vmul.f32 %v592, %v592
    %v783 = vmul.f32 %v593, %v593
    %v784 = vmul.f32 %v594, %v594
    %v785 = vmul.f32 %v595, %v595
    %v786 = vmul.f32 %v596, %v596
    %v787 = vmul.f32 %v597, %v597
    %v788 = vmul.f32 %v598, %v598
    %v789 = vmul.f32 %v599, %v599
    %v790 = vsub.f32 %v714, %v752
    %v791 = vsub.f32 %v715, %v753
    %v792 = vsub.f32 %v716, %v754
    %v793 = vsub.f32 %v717, %v755
    %v794 = vsub.f32 %v718, %v756
    %v795 = vsub.f32 %v719, %v757
    %v796 = vsub.f32 %v720, %v758
    %v797 = vsub.f32 %v721, %v759
    %v798 = vsub.f32 %v722, %v760
    %v799 = vsub.f32 %v723, %v761
    %v800 = vsub.f32 %v724, %v762
    %v801 = vsub.f32 %v725, %v763
    %v802 = vsub.f32 %v726, %v764
    %v803 = vsub.f32 %v727, %v765
    %v804 = vsub.f32 %v728, %v766
    %v805 = vsub.f32 %v729, %v767
    %v806 = vsub.f32 %v730, %v768
    %v807 = vsub.f32 %v731, %v769
    %v808 = vsub.f32 %v732, %v770
    %v809 = vsub.f32 %v733, %v771
    %v810 = vsub.f32 %v734, %v772
    %v811 = vsub.f32 %v735, %v773
    %v812 = vsub.f32 %v736, %v774
    %v813 = vsub.f32 %v737, %v775
    %v814 = vsub.f32 %v738, %v776
    %v815 = vsub.f32 %v739, %v777
    %v816 = vsub.f32 %v740, %v778
    %v817 = vsub.f32 %v741, %v779
    %v818 = vsub.f32 %v742, %v780
    %v819 = vsub.f32 %v743, %v781
    %v820 = vsub.f32 %v744, %v782
    %v821 = vsub.f32 %v745, %v783
    %v822 = vsub.f32 %v746, %v784
    %v823 = vsub.f32 %v747, %v785
    %v824 = vsub.f32 %v748, %v786
    %v825 = vsub.f32 %v749, %v787
    %v826 = vsub.f32 %v750, %v788
    %v827 = vsub.f32 %v751, %v789
    %v828 = vmax.f32 %v790, 0.0
    %v829 = vmax.f32 %v791, 0.0
    %v830 = vmax.f32 %v792, 0.0
    %v831 = vmax.f32 %v793, 0.0
    %v832 = vmax.f32 %v794, 0.0
    %v833 = vmax.f32 %v795, 0.0
    %v834 = vmax.f32 %v796, 0.0
    %v835 = vmax.f32 %v797, 0.0
    %v836 = vmax.f32 %v798, 0.0
    %v837 = vmax.f32 %v799, 0.0
    %v838 = vmax.f32 %v800, 0.0
    %v839 = vmax.f32 %v801, 0.0
    %v840 = vmax.f32 %v802, 0.0
    %v841 = vmax.f32 %v803, 0.0
    %v842 = vmax.f32 %v804, 0.0
    %v843 = vmax.f32 %v805, 0.0
    %v844 = vmax.f32 %v806, 0.0
    %v845 = vmax.f32 %v807, 0.0
    %v846 = vmax.f32 %v808, 0.0
    %v847 = vmax.f32 %v809, 0.0
    %v848 = vmax.f32 %v810, 0.0
    %v849 = vmax.f32 %v811, 0.0
    %v850 = vmax.f32 %v812, 0.0
    %v851 = vmax.f32 %v813, 0.0
    %v852 = vmax.f32 %v814, 0.0
    %v853 = vmax.f32 %v815, 0.0
    %v854 = vmax.f32 %v816, 0.0
    %v855 = vmax.f32 %v817, 0.0
    %v856 = vmax.f32 %v818, 0.0
    %v857 = vmax.f32 %v819, 0.0
    %v858 = vmax.f32 %v820, 0.0
    %v859 = vmax.f32 %v821, 0.0
    %v860 = vmax.f32 %v822, 0.0
    %v861 = vmax.f32 %v823, 0.0
    %v862 = vmax.f32 %v824, 0.0
    %v863 = vmax.f32 %v825, 0.0
    %v864 = vmax.f32 %v826, 0.0
    %v865 = vmax.f32 %v827, 0.0
    %v866 = vsub.f32 %v336, %v562
    %v867 = vsub.f32 %v339, %v563
    %v868 = vsub.f32 %v344, %v564
    %v869 = vsub.f32 %v347, %v565
    %v870 = vsub.f32 %v352, %v566
    %v871 = vsub.f32 %v355, %v567
    %v872 = vsub.f32 %v360, %v568
    %v873 = vsub.f32 %v363, %v569
    %v874 = vsub.f32 %v368, %v570
    %v875 = vsub.f32 %v371, %v571
    %v876 = vsub.f32 %v376, %v572
    %v877 = vsub.f32 %v379, %v573
    %v878 = vsub.f32 %v384, %v574
    %v879 = vsub.f32 %v387, %v575
    %v880 = vsub.f32 %v392, %v576
    %v881 = vsub.f32 %v395, %v577
    %v882 = vsub.f32 %v400, %v578
    %v883 = vsub.f32 %v403, %v579
    %v884 = vsub.f32 %v408, %v580
    %v885 = vsub.f32 %v411, %v581
    %v886 = vsub.f32 %v416, %v582
    %v887 = vsub.f32 %v419, %v583
    %v888 = vsub.f32 %v424, %v584
    %v889 = vsub.f32 %v427, %v585
    %v890 = vsub.f32 %v432, %v586
    %v891 = vsub.f32 %v435, %v587
    %v892 = vsub.f32 %v440, %v588
    %v893 = vsub.f32 %v443, %v589
    %v894 = vsub.f32 %v448, %v590
    %v895 = vsub.f32 %v451, %v591
    %v896 = vsub.f32 %v456, %v592
    %v897 = vsub.f32 %v459, %v593
    %v898 = vsub.f32 %v464, %v594
    %v899 = vsub.f32 %v467, %v595
    %v900 = vsub.f32 %v472, %v596
    %v901 = vsub.f32 %v475, %v597
    %v902 = vsub.f32 %v480, %v598
    %v903 = vsub.f32 %v483, %v599
    %v904 = vadd.f32 %v828, 0.001
    %v905 = vadd.f32 %v829, 0.001
    %v906 = vadd.f32 %v830, 0.001
    %v907 = vadd.f32 %v831, 0.001
    %v908 = vadd.f32 %v832, 0.001
    %v909 = vadd.f32 %v833, 0.001
    %v910 = vadd.f32 %v834, 0.001
    %v911 = vadd.f32 %v835, 0.001
    %v912 = vadd.f32 %v836, 0.001
    %v913 = vadd.f32 %v837, 0.001
    %v914 = vadd.f32 %v838, 0.001
    %v915 = vadd.f32 %v839, 0.001
    %v916 = vadd.f32 %v840, 0.001
    %v917 = vadd.f32 %v841, 0.001
    %v918 = vadd.f32 %v842, 0.001
    %v919 = vadd.f32 %v843, 0.001
    %v920 = vadd.f32 %v844, 0.001
    %v921 = vadd.f32 %v845, 0.001
    %v922 = vadd.f32 %v846, 0.001
    %v923 = vadd.f32 %v847, 0.001
    %v924 = vadd.f32 %v848, 0.001
    %v925 = vadd.f32 %v849, 0.001
    %v926 = vadd.f32 %v850, 0.001
    %v927 = vadd.f32 %v851, 0.001
    %v928 = vadd.f32 %v852, 0.001
    %v929 = vadd.f32 %v853, 0.001
    %v930 = vadd.f32 %v854, 0.001
    %v931 = vadd.f32 %v855, 0.001
    %v932 = vadd.f32 %v856, 0.001
    %v933 = vadd.f32 %v857, 0.001
    %v934 = vadd.f32 %v858, 0.001
    %v935 = vadd.f32 %v859, 0.001
    %v936 = vadd.f32 %v860, 0.001
    %v937 = vadd.f32 %v861, 0.001
    %v938 = vadd.f32 %v862, 0.001
    %v939 = vadd.f32 %v863, 0.001
    %v940 = vadd.f32 %v864, 0.001
    %v941 = vadd.f32 %v865, 0.001
    %v942 = vrsqrt.pop %v904
    %v943 = vrsqrt.pop %v905
    %v944 = vrsqrt.pop %v906
    %v945 = vrsqrt.pop %v907
    %v946 = vrsqrt.pop %v908
    %v947 = vrsqrt.pop %v909
    %v948 = vrsqrt.pop %v910
    %v949 = vrsqrt.pop %v911
    %v950 = vrsqrt.pop %v912
    %v951 = vrsqrt.pop %v913
    %v952 = vrsqrt.pop %v914
    %v953 = vrsqrt.pop %v915
    %v954 = vrsqrt.pop %v916
    %v955 = vrsqrt.pop %v917
    %v956 = vrsqrt.pop %v918
    %v957 = vrsqrt.pop %v919
    %v958 = vrsqrt.pop %v920
    %v959 = vrsqrt.pop %v921
    %v960 = vrsqrt.pop %v922
    %v961 = vrsqrt.pop %v923
    %v962 = vrsqrt.pop %v924
    %v963 = vrsqrt.pop %v925
    %v964 = vrsqrt.pop %v926
    %v965 = vrsqrt.pop %v927
    %v966 = vrsqrt.pop %v928
    %v967 = vrsqrt.pop %v929
    %v968 = vrsqrt.pop %v930
    %v969 = vrsqrt.pop %v931
    %v970 = vrsqrt.pop %v932
    %v971 = vrsqrt.pop %v933
    %v972 = vrsqrt.pop %v934
    %v973 = vrsqrt.pop %v935
    %v974 = vrsqrt.pop %v936
    %v975 = vrsqrt.pop %v937
    %v976 = vrsqrt.pop %v938
    %v977 = vrsqrt.pop %v939
    %v978 = vrsqrt.pop %v940
    %v979 = vrsqrt.pop %v941
    %v980 = vmul.f32 %v866, %v942
    %v981 = vmul.f32 %v867, %v943
    %v982 = vmul.f32 %v868, %v944
    %v983 = vmul.f32 %v869, %v945
    %v984 = vmul.f32 %v870, %v946
    %v985 = vmul.f32 %v871, %v947
    %v986 = vmul.f32 %v872, %v948
    %v987 = vmul.f32 %v873, %v949
    %v988 = vmul.f32 %v874, %v950
    %v989 = vmul.f32 %v875, %v951
    %v990 = vmul.f32 %v876, %v952
    %v991 = vmul.f32 %v877, %v953
    %v992 = vmul.f32 %v878, %v954
    %v993 = vmul.f32 %v879, %v955
    %v994 = vmul.f32 %v880, %v956
    %v995 = vmul.f32 %v881, %v957
    %v996 = vmul.f32 %v882, %v958
    %v997 = vmul.f32 %v883, %v959
    %v998 = vmul.f32 %v884, %v960
    %v999 = vmul.f32 %v885, %v961
    %v1000 = vmul.f32 %v886, %v962
    %v1001 = vmul.f32 %v887, %v963
    %v1002 = vmul.f32 %v888, %v964
    %v1003 = vmul.f32 %v889, %v965
    %v1004 = vmul.f32 %v890, %v966
    %v1005 = vmul.f32 %v891, %v967
    %v1006 = vmul.f32 %v892, %v968
    %v1007 = vmul.f32 %v893, %v969
    %v1008 = vmul.f32 %v894, %v970
    %v1009 = vmul.f32 %v895, %v971
    %v1010 = vmul.f32 %v896, %v972
    %v1011 = vmul.f32 %v897, %v973
    %v1012 = vmul.f32 %v898, %v974
    %v1013 = vmul.f32 %v899, %v975
    %v1014 = vmul.f32 %v900, %v976
    %v1015 = vmul.f32 %v901, %v977
    %v1016 = vmul.f32 %v902, %v978
    %v1017 = vmul.f32 %v903, %v979
    %v1019 = vlaneseq
    %v1020 = vshrl.u32 %v1019, 7
    %v1021 = vsub.s32 0, %v1020
    %v1022 = vrot.slane %v137, %v1021
    %v1024 = vmul.f32 %v980, %v1022
    %v1025 = vmul.f32 %v981, %v1022
    %v1026 = vmul.f32 %v982, %v1022
    %v1027 = vmul.f32 %v983, %v1022
    %v1028 = vmul.f32 %v984, %v1022
    %v1029 = vmul.f32 %v985, %v1022
    %v1030 = vmul.f32 %v986, %v1022
    %v1031 = vmul.f32 %v987, %v1022
    %v1032 = vmul.f32 %v988, %v1022
    %v1033 = vmul.f32 %v989, %v1022
    %v1034 = vmul.f32 %v990, %v1022
    %v1035 = vmul.f32 %v991, %v1022
    %v1036 = vmul.f32 %v992, %v1022
    %v1037 = vmul.f32 %v993, %v1022
    %v1038 = vmul.f32 %v994, %v1022
    %v1039 = vmul.f32 %v995, %v1022
    %v1040 = vmul.f32 %v996, %v1022
    %v1041 = vmul.f32 %v997, %v1022
    %v1042 = vmul.f32 %v998, %v1022
    %v1043 = vmul.f32 %v999, %v1022
    %v1044 = vmul.f32 %v1000, %v1022
    %v1045 = vmul.f32 %v1001, %v1022
    %v1046 = vmul.f32 %v1002, %v1022
    %v1047 = vmul.f32 %v1003, %v1022
    %v1048 = vmul.f32 %v1004, %v1022
    %v1049 = vmul.f32 %v1005, %v1022
    %v1050 = vmul.f32 %v1006, %v1022
    %v1051 = vmul.f32 %v1007, %v1022
    %v1052 = vmul.f32 %v1008, %v1022
    %v1053 = vmul.f32 %v1009, %v1022
    %v1054 = vmul.f32 %v1010, %v1022
    %v1055 = vmul.f32 %v1011, %v1022
    %v1056 = vmul.f32 %v1012, %v1022
    %v1057 = vmul.f32 %v1013, %v1022
    %v1058 = vmul.f32 %v1014, %v1022
    %v1059 = vmul.f32 %v1015, %v1022
    %v1060 = vmul.f32 %v1016, %v1022
    %v1061 = vmul.f32 %v1017, %v1022
    %v1063 = vlaneseq
    %v1064 = vshrl.u32 %v1063, 7
    %v1065 = vsub.s32 0, %v1064
    %v1066 = vrot.slane %v138, %v1065
    %v1068 = vadd.f32 %v1024, %v1066
    %v1069 = vadd.f32 %v1025, %v1066
    %v1070 = vadd.f32 %v1026, %v1066
    %v1071 = vadd.f32 %v1027, %v1066
    %v1072 = vadd.f32 %v1028, %v1066
    %v1073 = vadd.f32 %v1029, %v1066
    %v1074 = vadd.f32 %v1030, %v1066
    %v1075 = vadd.f32 %v1031, %v1066
    %v1076 = vadd.f32 %v1032, %v1066
    %v1077 = vadd.f32 %v1033, %v1066
    %v1078 = vadd.f32 %v1034, %v1066
    %v1079 = vadd.f32 %v1035, %v1066
    %v1080 = vadd.f32 %v1036, %v1066
    %v1081 = vadd.f32 %v1037, %v1066
    %v1082 = vadd.f32 %v1038, %v1066
    %v1083 = vadd.f32 %v1039, %v1066
    %v1084 = vadd.f32 %v1040, %v1066
    %v1085 = vadd.f32 %v1041, %v1066
    %v1086 = vadd.f32 %v1042, %v1066
    %v1087 = vadd.f32 %v1043, %v1066
    %v1088 = vadd.f32 %v1044, %v1066
    %v1089 = vadd.f32 %v1045, %v1066
    %v1090 = vadd.f32 %v1046, %v1066
    %v1091 = vadd.f32 %v1047, %v1066
    %v1092 = vadd.f32 %v1048, %v1066
    %v1093 = vadd.f32 %v1049, %v1066
    %v1094 = vadd.f32 %v1050, %v1066
    %v1095 = vadd.f32 %v1051, %v1066
    %v1096 = vadd.f32 %v1052, %v1066
    %v1097 = vadd.f32 %v1053, %v1066
    %v1098 = vadd.f32 %v1054, %v1066
    %v1099 = vadd.f32 %v1055, %v1066
    %v1100 = vadd.f32 %v1056, %v1066
    %v1101 = vadd.f32 %v1057, %v1066
    %v1102 = vadd.f32 %v1058, %v1066
    %v1103 = vadd.f32 %v1059, %v1066
    %v1104 = vadd.f32 %v1060, %v1066
    %v1105 = vadd.f32 %v1061, %v1066
    %v1106 = vsub.f32 0.0, %v1068
    %v1107 = vsub.f32 0.0, %v1069
    %v1108 = vsub.f32 0.0, %v1070
    %v1109 = vsub.f32 0.0, %v1071
    %v1110 = vsub.f32 0.0, %v1072
    %v1111 = vsub.f32 0.0, %v1073
    %v1112 = vsub.f32 0.0, %v1074
    %v1113 = vsub.f32 0.0, %v1075
    %v1114 = vsub.f32 0.0, %v1076
    %v1115 = vsub.f32 0.0, %v1077
    %v1116 = vsub.f32 0.0, %v1078
    %v1117 = vsub.f32 0.0, %v1079
    %v1118 = vsub.f32 0.0, %v1080
    %v1119 = vsub.f32 0.0, %v1081
    %v1120 = vsub.f32 0.0, %v1082
    %v1121 = vsub.f32 0.0, %v1083
    %v1122 = vsub.f32 0.0, %v1084
    %v1123 = vsub.f32 0.0, %v1085
    %v1124 = vsub.f32 0.0, %v1086
    %v1125 = vsub.f32 0.0, %v1087
    %v1126 = vsub.f32 0.0, %v1088
    %v1127 = vsub.f32 0.0, %v1089
    %v1128 = vsub.f32 0.0, %v1090
    %v1129 = vsub.f32 0.0, %v1091
    %v1130 = vsub.f32 0.0, %v1092
    %v1131 = vsub.f32 0.0, %v1093
    %v1132 = vsub.f32 0.0, %v1094
    %v1133 = vsub.f32 0.0, %v1095
    %v1134 = vsub.f32 0.0, %v1096
    %v1135 = vsub.f32 0.0, %v1097
    %v1136 = vsub.f32 0.0, %v1098
    %v1137 = vsub.f32 0.0, %v1099
    %v1138 = vsub.f32 0.0, %v1100
    %v1139 = vsub.f32 0.0, %v1101
    %v1140 = vsub.f32 0.0, %v1102
    %v1141 = vsub.f32 0.0, %v1103
    %v1142 = vsub.f32 0.0, %v1104
    %v1143 = vsub.f32 0.0, %v1105
    %v1144 = vmul.f32 %v1106, 1.442695
    %v1145 = vpow.pop %v1144
    %v1146 = vmul.f32 %v1107, 1.442695
    %v1147 = vpow.pop %v1146
    %v1148 = vmul.f32 %v1108, 1.442695
    %v1149 = vpow.pop %v1148
    %v1150 = vmul.f32 %v1109, 1.442695
    %v1151 = vpow.pop %v1150
    %v1152 = vmul.f32 %v1110, 1.442695
    %v1153 = vpow.pop %v1152
    %v1154 = vmul.f32 %v1111, 1.442695
    %v1155 = vpow.pop %v1154
    %v1156 = vmul.f32 %v1112, 1.442695
    %v1157 = vpow.pop %v1156
    %v1158 = vmul.f32 %v1113, 1.442695
    %v1159 = vpow.pop %v1158
    %v1160 = vmul.f32 %v1114, 1.442695
    %v1161 = vpow.pop %v1160
    %v1162 = vmul.f32 %v1115, 1.442695
    %v1163 = vpow.pop %v1162
    %v1164 = vmul.f32 %v1116, 1.442695
    %v1165 = vpow.pop %v1164
    %v1166 = vmul.f32 %v1117, 1.442695
    %v1167 = vpow.pop %v1166
    %v1168 = vmul.f32 %v1118, 1.442695
    %v1169 = vpow.pop %v1168
    %v1170 = vmul.f32 %v1119, 1.442695
    %v1171 = vpow.pop %v1170
    %v1172 = vmul.f32 %v1120, 1.442695
    %v1173 = vpow.pop %v1172
    %v1174 = vmul.f32 %v1121, 1.442695
    %v1175 = vpow.pop %v1174
    %v1176 = vmul.f32 %v1122, 1.442695
    %v1177 = vpow.pop %v1176
    %v1178 = vmul.f32 %v1123, 1.442695
    %v1179 = vpow.pop %v1178
    %v1180 = vmul.f32 %v1124, 1.442695
    %v1181 = vpow.pop %v1180
    %v1182 = vmul.f32 %v1125, 1.442695
    %v1183 = vpow.pop %v1182
    %v1184 = vmul.f32 %v1126, 1.442695
    %v1185 = vpow.pop %v1184
    %v1186 = vmul.f32 %v1127, 1.442695
    %v1187 = vpow.pop %v1186
    %v1188 = vmul.f32 %v1128, 1.442695
    %v1189 = vpow.pop %v1188
    %v1190 = vmul.f32 %v1129, 1.442695
    %v1191 = vpow.pop %v1190
    %v1192 = vmul.f32 %v1130, 1.442695
    %v1193 = vpow.pop %v1192
    %v1194 = vmul.f32 %v1131, 1.442695
    %v1195 = vpow.pop %v1194
    %v1196 = vmul.f32 %v1132, 1.442695
    %v1197 = vpow.pop %v1196
    %v1198 = vmul.f32 %v1133, 1.442695
    %v1199 = vpow.pop %v1198
    %v1200 = vmul.f32 %v1134, 1.442695
    %v1201 = vpow.pop %v1200
    %v1202 = vmul.f32 %v1135, 1.442695
    %v1203 = vpow.pop %v1202
    %v1204 = vmul.f32 %v1136, 1.442695
    %v1205 = vpow.pop %v1204
    %v1206 = vmul.f32 %v1137, 1.442695
    %v1207 = vpow.pop %v1206
    %v1208 = vmul.f32 %v1138, 1.442695
    %v1209 = vpow.pop %v1208
    %v1210 = vmul.f32 %v1139, 1.442695
    %v1211 = vpow.pop %v1210
    %v1212 = vmul.f32 %v1140, 1.442695
    %v1213 = vpow.pop %v1212
    %v1214 = vmul.f32 %v1141, 1.442695
    %v1215 = vpow.pop %v1214
    %v1216 = vmul.f32 %v1142, 1.442695
    %v1217 = vpow.pop %v1216
    %v1218 = vmul.f32 %v1143, 1.442695
    %v1219 = vpow.pop %v1218
    %v1220 = vadd.f32 %v1145, 1.0
    %v1221 = vadd.f32 %v1147, 1.0
    %v1222 = vadd.f32 %v1149, 1.0
    %v1223 = vadd.f32 %v1151, 1.0
    %v1224 = vadd.f32 %v1153, 1.0
    %v1225 = vadd.f32 %v1155, 1.0
    %v1226 = vadd.f32 %v1157, 1.0
    %v1227 = vadd.f32 %v1159, 1.0
    %v1228 = vadd.f32 %v1161, 1.0
    %v1229 = vadd.f32 %v1163, 1.0
    %v1230 = vadd.f32 %v1165, 1.0
    %v1231 = vadd.f32 %v1167, 1.0
    %v1232 = vadd.f32 %v1169, 1.0
    %v1233 = vadd.f32 %v1171, 1.0
    %v1234 = vadd.f32 %v1173, 1.0
    %v1235 = vadd.f32 %v1175, 1.0
    %v1236 = vadd.f32 %v1177, 1.0
    %v1237 = vadd.f32 %v1179, 1.0
    %v1238 = vadd.f32 %v1181, 1.0
    %v1239 = vadd.f32 %v1183, 1.0
    %v1240 = vadd.f32 %v1185, 1.0
    %v1241 = vadd.f32 %v1187, 1.0
    %v1242 = vadd.f32 %v1189, 1.0
    %v1243 = vadd.f32 %v1191, 1.0
    %v1244 = vadd.f32 %v1193, 1.0
    %v1245 = vadd.f32 %v1195, 1.0
    %v1246 = vadd.f32 %v1197, 1.0
    %v1247 = vadd.f32 %v1199, 1.0
    %v1248 = vadd.f32 %v1201, 1.0
    %v1249 = vadd.f32 %v1203, 1.0
    %v1250 = vadd.f32 %v1205, 1.0
    %v1251 = vadd.f32 %v1207, 1.0
    %v1252 = vadd.f32 %v1209, 1.0
    %v1253 = vadd.f32 %v1211, 1.0
    %v1254 = vadd.f32 %v1213, 1.0
    %v1255 = vadd.f32 %v1215, 1.0
    %v1256 = vadd.f32 %v1217, 1.0
    %v1257 = vadd.f32 %v1219, 1.0
    %v1258 = vrcp.pop %v1220
    %v1259 = vrcp.pop %v1221
    %v1260 = vrcp.pop %v1222
    %v1261 = vrcp.pop %v1223
    %v1262 = vrcp.pop %v1224
    %v1263 = vrcp.pop %v1225
    %v1264 = vrcp.pop %v1226
    %v1265 = vrcp.pop %v1227
    %v1266 = vrcp.pop %v1228
    %v1267 = vrcp.pop %v1229
    %v1268 = vrcp.pop %v1230
    %v1269 = vrcp.pop %v1231
    %v1270 = vrcp.pop %v1232
    %v1271 = vrcp.pop %v1233
    %v1272 = vrcp.pop %v1234
    %v1273 = vrcp.pop %v1235
    %v1274 = vrcp.pop %v1236
    %v1275 = vrcp.pop %v1237
    %v1276 = vrcp.pop %v1238
    %v1277 = vrcp.pop %v1239
    %v1278 = vrcp.pop %v1240
    %v1279 = vrcp.pop %v1241
    %v1280 = vrcp.pop %v1242
    %v1281 = vrcp.pop %v1243
    %v1282 = vrcp.pop %v1244
    %v1283 = vrcp.pop %v1245
    %v1284 = vrcp.pop %v1246
    %v1285 = vrcp.pop %v1247
    %v1286 = vrcp.pop %v1248
    %v1287 = vrcp.pop %v1249
    %v1288 = vrcp.pop %v1250
    %v1289 = vrcp.pop %v1251
    %v1290 = vrcp.pop %v1252
    %v1291 = vrcp.pop %v1253
    %v1292 = vrcp.pop %v1254
    %v1293 = vrcp.pop %v1255
    %v1294 = vrcp.pop %v1256
    %v1295 = vrcp.pop %v1257
    %v1296 = vmul.f32 %v1068, %v1258
    %v1297 = vmul.f32 %v1069, %v1259
    %v1298 = vmul.f32 %v1070, %v1260
    %v1299 = vmul.f32 %v1071, %v1261
    %v1300 = vmul.f32 %v1072, %v1262
    %v1301 = vmul.f32 %v1073, %v1263
    %v1302 = vmul.f32 %v1074, %v1264
    %v1303 = vmul.f32 %v1075, %v1265
    %v1304 = vmul.f32 %v1076, %v1266
    %v1305 = vmul.f32 %v1077, %v1267
    %v1306 = vmul.f32 %v1078, %v1268
    %v1307 = vmul.f32 %v1079, %v1269
    %v1308 = vmul.f32 %v1080, %v1270
    %v1309 = vmul.f32 %v1081, %v1271
    %v1310 = vmul.f32 %v1082, %v1272
    %v1311 = vmul.f32 %v1083, %v1273
    %v1312 = vmul.f32 %v1084, %v1274
    %v1313 = vmul.f32 %v1085, %v1275
    %v1314 = vmul.f32 %v1086, %v1276
    %v1315 = vmul.f32 %v1087, %v1277
    %v1316 = vmul.f32 %v1088, %v1278
    %v1317 = vmul.f32 %v1089, %v1279
    %v1318 = vmul.f32 %v1090, %v1280
    %v1319 = vmul.f32 %v1091, %v1281
    %v1320 = vmul.f32 %v1092, %v1282
    %v1321 = vmul.f32 %v1093, %v1283
    %v1322 = vmul.f32 %v1094, %v1284
    %v1323 = vmul.f32 %v1095, %v1285
    %v1324 = vmul.f32 %v1096, %v1286
    %v1325 = vmul.f32 %v1097, %v1287
    %v1326 = vmul.f32 %v1098, %v1288
    %v1327 = vmul.f32 %v1099, %v1289
    %v1328 = vmul.f32 %v1100, %v1290
    %v1329 = vmul.f32 %v1101, %v1291
    %v1330 = vmul.f32 %v1102, %v1292
    %v1331 = vmul.f32 %v1103, %v1293
    %v1332 = vmul.f32 %v1104, %v1294
    %v1333 = vmul.f32 %v1105, %v1295
    %v1334 = vld [vmem:[#allocation7] sm:$0xf]
    %v1335 = vld [vmem:[#allocation7 + $0x4] sm:$0xf]
    %v1336 = vld [vmem:[#allocation7 + $0x8] sm:$0xf]
    %v1337 = vld [vmem:[#allocation7 + $0xc] sm:$0xf]
    %v1338 = vld [vmem:[#allocation7 + $0x10] sm:$0xf]
    %v1339 = vld [vmem:[#allocation7 + $0x14] sm:$0xf]
    %v1340 = vld [vmem:[#allocation7 + $0x18] sm:$0xf]
    %v1341 = vld [vmem:[#allocation7 + $0x1c] sm:$0xf]
    %v1342 = vld [vmem:[#allocation7 + $0x20] sm:$0xf]
    %v1343 = vld [vmem:[#allocation7 + $0x24] sm:$0xf]
    %v1344 = vld [vmem:[#allocation7 + $0x28] sm:$0xf]
    %v1345 = vld [vmem:[#allocation7 + $0x2c] sm:$0xf]
    %v1346 = vld [vmem:[#allocation7 + $0x30] sm:$0xf]
    %v1347 = vld [vmem:[#allocation7 + $0x34] sm:$0xf]
    %v1348 = vld [vmem:[#allocation7 + $0x38] sm:$0xf]
    %v1349 = vld [vmem:[#allocation7 + $0x3c] sm:$0xf]
    %s1350 = scalar_lea.vmem %s3, 1
    %v1351 = vld [vmem:[%s1350] sm:$0x1]
    %s1352 = scalar_lea.vmem %s4, 1
    %v1353 = vld [vmem:[%s1352] sm:$0x1]
    %v1354 = vpack.c.bf16 %v1297, %v1296
    %v1355 = vpack.c.bf16 %v1299, %v1298
    %v1356 = vpack.c.bf16 %v1301, %v1300
    %v1357 = vpack.c.bf16 %v1303, %v1302
    %v1358 = vpack.c.bf16 %v1305, %v1304
    %v1359 = vpack.c.bf16 %v1307, %v1306
    %v1360 = vpack.c.bf16 %v1309, %v1308
    %v1361 = vpack.c.bf16 %v1311, %v1310
    %v1362 = vpack.c.bf16 %v1313, %v1312
    %v1363 = vpack.c.bf16 %v1315, %v1314
    %v1364 = vpack.c.bf16 %v1317, %v1316
    %v1365 = vpack.c.bf16 %v1319, %v1318
    %v1366 = vpack.c.bf16 %v1321, %v1320
    %v1367 = vpack.c.bf16 %v1323, %v1322
    %v1368 = vpack.c.bf16 %v1325, %v1324
    %v1369 = vpack.c.bf16 %v1327, %v1326
    %v1370 = vpack.c.bf16 %v1329, %v1328
    %v1371 = vpack.c.bf16 %v1331, %v1330
    %v1372 = vpack.c.bf16 %v1333, %v1332
    %v1389 = vunpack.c.l.b16 %v1334
    %v1390 = vunpack.c.l.b16 %v1335
    %v1391 = vunpack.c.l.b16 %v1336
    %v1392 = vunpack.c.l.b16 %v1337
    %v1393 = vunpack.c.l.b16 %v1338
    %v1394 = vunpack.c.l.b16 %v1339
    %v1395 = vunpack.c.l.b16 %v1340
    %v1396 = vunpack.c.l.b16 %v1341
    %v1397 = vunpack.c.l.b16 %v1342
    %v1398 = vunpack.c.l.b16 %v1343
    %v1399 = vunpack.c.l.b16 %v1344
    %v1400 = vunpack.c.l.b16 %v1345
    %v1401 = vunpack.c.l.b16 %v1346
    %v1402 = vunpack.c.l.b16 %v1347
    %v1403 = vunpack.c.l.b16 %v1348
    %v1404 = vunpack.c.l.b16 %v1349
    %v1405 = vpack.c.b16 %v1390, %v1389
    %v1406 = vpack.c.b16 %v1392, %v1391
    %v1407 = vpack.c.b16 %v1394, %v1393
    %v1408 = vpack.c.b16 %v1396, %v1395
    %v1409 = vpack.c.b16 %v1398, %v1397
    %v1410 = vpack.c.b16 %v1400, %v1399
    %v1411 = vpack.c.b16 %v1402, %v1401
    %v1412 = vpack.c.b16 %v1404, %v1403
    %1421 = vmatprep.subr.bf16.mxu0 0
    %1422 = vmatpush1.bf16.msra.mxu0 %v1412
    %1423 = vmatprep.subr.bf16.mxu0 0
    %1424 = vmatpush1.bf16.msra.mxu0 %v1411
    %1425 = vmatprep.subr.bf16.mxu0 0
    %1426 = vmatpush1.bf16.msra.mxu0 %v1410
    %1427 = vmatprep.subr.bf16.mxu0 0
    %1428 = vmatpush1.bf16.msra.mxu0 %v1409
    %1429 = vmatprep.subr.bf16.mxu0 0
    %1430 = vmatpush1.bf16.msra.mxu0 %v1408
    %1431 = vmatprep.subr.bf16.mxu0 0
    %1432 = vmatpush1.bf16.msra.mxu0 %v1407
    %1433 = vmatprep.subr.bf16.mxu0 0
    %1434 = vmatpush1.bf16.msra.mxu0 %v1406
    %1435 = vmatprep.subr.bf16.mxu0 0
    %1436 = vmatpush1.bf16.msra.mxu0 %v1405
    %1437 = vmatprep.subr.bf16.mxu0 0
    %1438 = vmatpush2.bf16.msra.mxu0 0
    %1439 = vmatprep.subr.bf16.mxu0 0
    %1440 = vmatpush2.bf16.msra.mxu0 0
    %1441 = vmatprep.subr.bf16.mxu0 0
    %1442 = vmatpush2.bf16.msra.mxu0 0
    %1443 = vmatprep.subr.bf16.mxu0 0
    %1444 = vmatpush2.bf16.msra.mxu0 0
    %1445 = vmatprep.subr.bf16.mxu0 0
    %1446 = vmatpush2.bf16.msra.mxu0 0
    %1447 = vmatprep.subr.bf16.mxu0 0
    %1448 = vmatpush2.bf16.msra.mxu0 0
    %1449 = vmatprep.subr.bf16.mxu0 0
    %1450 = vmatpush2.bf16.msra.mxu0 0
    %1451 = vmatprep.subr.bf16.mxu0 0
    %1452 = vmatpush2.bf16.msra.mxu0 0
    %1453 = vmatprep.mubr.bf16.mxu0 0
    %1454 = vmatmul.mubr.bf16.gmra.mxu0 %v1354
    %v1455 = vpop.f32.mrf.mxu0
    %v1456 = vadd.f32 0.0, %v1455
    %v1457 = vpop.f32.mrf.mxu0
    %v1458 = vpop.f32.mrf.mxu0
    %v1459 = vadd.f32 0.0, %v1458
    %v1460 = vpop.f32.mrf.mxu0
    %1461 = vmatprep.mubr.bf16.mxu0 0
    %1462 = vmatmul.mubr.bf16.gmra.mxu0 %v1355
    %v1463 = vpop.f32.mrf.mxu0
    %v1464 = vadd.f32 0.0, %v1463
    %v1465 = vpop.f32.mrf.mxu0
    %v1466 = vpop.f32.mrf.mxu0
    %v1467 = vadd.f32 0.0, %v1466
    %v1468 = vpop.f32.mrf.mxu0
    %1469 = vmatprep.mubr.bf16.mxu0 0
    %1470 = vmatmul.mubr.bf16.gmra.mxu0 %v1356
    %v1471 = vpop.f32.mrf.mxu0
    %v1472 = vadd.f32 0.0, %v1471
    %v1473 = vpop.f32.mrf.mxu0
    %v1474 = vpop.f32.mrf.mxu0
    %v1475 = vadd.f32 0.0, %v1474
    %v1476 = vpop.f32.mrf.mxu0
    %1477 = vmatprep.mubr.bf16.mxu0 0
    %1478 = vmatmul.mubr.bf16.gmra.mxu0 %v1357
    %v1479 = vpop.f32.mrf.mxu0
    %v1480 = vadd.f32 0.0, %v1479
    %v1481 = vpop.f32.mrf.mxu0
    %v1482 = vpop.f32.mrf.mxu0
    %v1483 = vadd.f32 0.0, %v1482
    %v1484 = vpop.f32.mrf.mxu0
    %1485 = vmatprep.mubr.bf16.mxu0 0
    %1486 = vmatmul.mubr.bf16.gmra.mxu0 %v1358
    %v1487 = vpop.f32.mrf.mxu0
    %v1488 = vadd.f32 0.0, %v1487
    %v1489 = vpop.f32.mrf.mxu0
    %v1490 = vpop.f32.mrf.mxu0
    %v1491 = vadd.f32 0.0, %v1490
    %v1492 = vpop.f32.mrf.mxu0
    %1493 = vmatprep.mubr.bf16.mxu0 0
    %1494 = vmatmul.mubr.bf16.gmra.mxu0 %v1359
    %v1495 = vpop.f32.mrf.mxu0
    %v1496 = vadd.f32 0.0, %v1495
    %v1497 = vpop.f32.mrf.mxu0
    %v1498 = vpop.f32.mrf.mxu0
    %v1499 = vadd.f32 0.0, %v1498
    %v1500 = vpop.f32.mrf.mxu0
    %1501 = vmatprep.mubr.bf16.mxu0 0
    %1502 = vmatmul.mubr.bf16.gmra.mxu0 %v1360
    %v1503 = vpop.f32.mrf.mxu0
    %v1504 = vadd.f32 0.0, %v1503
    %v1505 = vpop.f32.mrf.mxu0
    %v1506 = vpop.f32.mrf.mxu0
    %v1507 = vadd.f32 0.0, %v1506
    %v1508 = vpop.f32.mrf.mxu0
    %1509 = vmatprep.mubr.bf16.mxu0 0
    %1510 = vmatmul.mubr.bf16.gmra.mxu0 %v1361
    %v1511 = vpop.f32.mrf.mxu0
    %v1512 = vadd.f32 0.0, %v1511
    %v1513 = vpop.f32.mrf.mxu0
    %v1514 = vpop.f32.mrf.mxu0
    %v1515 = vadd.f32 0.0, %v1514
    %v1516 = vpop.f32.mrf.mxu0
    %1517 = vmatprep.mubr.bf16.mxu0 0
    %1518 = vmatmul.mubr.bf16.gmra.mxu0 %v1362
    %v1519 = vpop.f32.mrf.mxu0
    %v1520 = vadd.f32 0.0, %v1519
    %v1521 = vpop.f32.mrf.mxu0
    %v1522 = vpop.f32.mrf.mxu0
    %v1523 = vadd.f32 0.0, %v1522
    %v1524 = vpop.f32.mrf.mxu0
    %1525 = vmatprep.mubr.bf16.mxu0 0
    %1526 = vmatmul.mubr.bf16.gmra.mxu0 %v1363
    %v1527 = vpop.f32.mrf.mxu0
    %v1528 = vadd.f32 0.0, %v1527
    %v1529 = vpop.f32.mrf.mxu0
    %v1530 = vpop.f32.mrf.mxu0
    %v1531 = vadd.f32 0.0, %v1530
    %v1532 = vpop.f32.mrf.mxu0
    %1533 = vmatprep.mubr.bf16.mxu0 0
    %1534 = vmatmul.mubr.bf16.gmra.mxu0 %v1364
    %v1535 = vpop.f32.mrf.mxu0
    %v1536 = vadd.f32 0.0, %v1535
    %v1537 = vpop.f32.mrf.mxu0
    %v1538 = vpop.f32.mrf.mxu0
    %v1539 = vadd.f32 0.0, %v1538
    %v1540 = vpop.f32.mrf.mxu0
    %1541 = vmatprep.mubr.bf16.mxu0 0
    %1542 = vmatmul.mubr.bf16.gmra.mxu0 %v1365
    %v1543 = vpop.f32.mrf.mxu0
    %v1544 = vadd.f32 0.0, %v1543
    %v1545 = vpop.f32.mrf.mxu0
    %v1546 = vpop.f32.mrf.mxu0
    %v1547 = vadd.f32 0.0, %v1546
    %v1548 = vpop.f32.mrf.mxu0
    %1549 = vmatprep.mubr.bf16.mxu0 0
    %1550 = vmatmul.mubr.bf16.gmra.mxu0 %v1366
    %v1551 = vpop.f32.mrf.mxu0
    %v1552 = vadd.f32 0.0, %v1551
    %v1553 = vpop.f32.mrf.mxu0
    %v1554 = vpop.f32.mrf.mxu0
    %v1555 = vadd.f32 0.0, %v1554
    %v1556 = vpop.f32.mrf.mxu0
    %1557 = vmatprep.mubr.bf16.mxu0 0
    %1558 = vmatmul.mubr.bf16.gmra.mxu0 %v1367
    %v1559 = vpop.f32.mrf.mxu0
    %v1560 = vadd.f32 0.0, %v1559
    %v1561 = vpop.f32.mrf.mxu0
    %v1562 = vpop.f32.mrf.mxu0
    %v1563 = vadd.f32 0.0, %v1562
    %v1564 = vpop.f32.mrf.mxu0
    %1565 = vmatprep.mubr.bf16.mxu0 0
    %1566 = vmatmul.mubr.bf16.gmra.mxu0 %v1368
    %v1567 = vpop.f32.mrf.mxu0
    %v1568 = vadd.f32 0.0, %v1567
    %v1569 = vpop.f32.mrf.mxu0
    %v1570 = vpop.f32.mrf.mxu0
    %v1571 = vadd.f32 0.0, %v1570
    %v1572 = vpop.f32.mrf.mxu0
    %1573 = vmatprep.mubr.bf16.mxu0 0
    %1574 = vmatmul.mubr.bf16.gmra.mxu0 %v1369
    %v1575 = vpop.f32.mrf.mxu0
    %v1576 = vadd.f32 0.0, %v1575
    %v1577 = vpop.f32.mrf.mxu0
    %v1578 = vpop.f32.mrf.mxu0
    %v1579 = vadd.f32 0.0, %v1578
    %v1580 = vpop.f32.mrf.mxu0
    %1581 = vmatprep.mubr.bf16.mxu0 0
    %1582 = vmatmul.mubr.bf16.gmra.mxu0 %v1370
    %v1583 = vpop.f32.mrf.mxu0
    %v1584 = vadd.f32 0.0, %v1583
    %v1585 = vpop.f32.mrf.mxu0
    %v1586 = vpop.f32.mrf.mxu0
    %v1587 = vadd.f32 0.0, %v1586
    %v1588 = vpop.f32.mrf.mxu0
    %1589 = vmatprep.mubr.bf16.mxu0 0
    %1590 = vmatmul.mubr.bf16.gmra.mxu0 %v1371
    %v1591 = vpop.f32.mrf.mxu0
    %v1592 = vadd.f32 0.0, %v1591
    %v1593 = vpop.f32.mrf.mxu0
    %v1594 = vpop.f32.mrf.mxu0
    %v1595 = vadd.f32 0.0, %v1594
    %v1596 = vpop.f32.mrf.mxu0
    %1597 = vmatprep.mubr.bf16.mxu0 0
    %1598 = vmatmul.mubr.bf16.gmra.mxu0 %v1372
    %v1599 = vpop.f32.mrf.mxu0
    %v1600 = vadd.f32 0.0, %v1599
    %v1601 = vpop.f32.mrf.mxu0
    %v1602 = vpop.f32.mrf.mxu0
    %v1603 = vadd.f32 0.0, %v1602
    %v1604 = vpop.f32.mrf.mxu0
    %1605 = vdwg.mxu0
    %1606 = vadd.xlane.f32.xlu0 %v1456
    %v1607 = vpop.xlane.xlu0 %1606
    %1608 = vadd.xlane.f32.xlu0 %v1459
    %v1609 = vpop.xlane.xlu0 %1608
    %1610 = vadd.xlane.f32.xlu0 %v1464
    %v1611 = vpop.xlane.xlu0 %1610
    %1612 = vadd.xlane.f32.xlu0 %v1467
    %v1613 = vpop.xlane.xlu0 %1612
    %1614 = vadd.xlane.f32.xlu0 %v1472
    %v1615 = vpop.xlane.xlu0 %1614
    %1616 = vadd.xlane.f32.xlu0 %v1475
    %v1617 = vpop.xlane.xlu0 %1616
    %1618 = vadd.xlane.f32.xlu0 %v1480
    %v1619 = vpop.xlane.xlu0 %1618
    %1620 = vadd.xlane.f32.xlu0 %v1483
    %v1621 = vpop.xlane.xlu0 %1620
    %1622 = vadd.xlane.f32.xlu0 %v1488
    %v1623 = vpop.xlane.xlu0 %1622
    %1624 = vadd.xlane.f32.xlu0 %v1491
    %v1625 = vpop.xlane.xlu0 %1624
    %1626 = vadd.xlane.f32.xlu0 %v1496
    %v1627 = vpop.xlane.xlu0 %1626
    %1628 = vadd.xlane.f32.xlu0 %v1499
    %v1629 = vpop.xlane.xlu0 %1628
    %1630 = vadd.xlane.f32.xlu0 %v1504
    %v1631 = vpop.xlane.xlu0 %1630
    %1632 = vadd.xlane.f32.xlu0 %v1507
    %v1633 = vpop.xlane.xlu0 %1632
    %1634 = vadd.xlane.f32.xlu0 %v1512
    %v1635 = vpop.xlane.xlu0 %1634
    %1636 = vadd.xlane.f32.xlu0 %v1515
    %v1637 = vpop.xlane.xlu0 %1636
    %1638 = vadd.xlane.f32.xlu0 %v1520
    %v1639 = vpop.xlane.xlu0 %1638
    %1640 = vadd.xlane.f32.xlu0 %v1523
    %v1641 = vpop.xlane.xlu0 %1640
    %1642 = vadd.xlane.f32.xlu0 %v1528
    %v1643 = vpop.xlane.xlu0 %1642
    %1644 = vadd.xlane.f32.xlu0 %v1531
    %v1645 = vpop.xlane.xlu0 %1644
    %1646 = vadd.xlane.f32.xlu0 %v1536
    %v1647 = vpop.xlane.xlu0 %1646
    %1648 = vadd.xlane.f32.xlu0 %v1539
    %v1649 = vpop.xlane.xlu0 %1648
    %1650 = vadd.xlane.f32.xlu0 %v1544
    %v1651 = vpop.xlane.xlu0 %1650
    %1652 = vadd.xlane.f32.xlu0 %v1547
    %v1653 = vpop.xlane.xlu0 %1652
    %1654 = vadd.xlane.f32.xlu0 %v1552
    %v1655 = vpop.xlane.xlu0 %1654
    %1656 = vadd.xlane.f32.xlu0 %v1555
    %v1657 = vpop.xlane.xlu0 %1656
    %1658 = vadd.xlane.f32.xlu0 %v1560
    %v1659 = vpop.xlane.xlu0 %1658
    %1660 = vadd.xlane.f32.xlu0 %v1563
    %v1661 = vpop.xlane.xlu0 %1660
    %1662 = vadd.xlane.f32.xlu0 %v1568
    %v1663 = vpop.xlane.xlu0 %1662
    %1664 = vadd.xlane.f32.xlu0 %v1571
    %v1665 = vpop.xlane.xlu0 %1664
    %1666 = vadd.xlane.f32.xlu0 %v1576
    %v1667 = vpop.xlane.xlu0 %1666
    %1668 = vadd.xlane.f32.xlu0 %v1579
    %v1669 = vpop.xlane.xlu0 %1668
    %1670 = vadd.xlane.f32.xlu0 %v1584
    %v1671 = vpop.xlane.xlu0 %1670
    %1672 = vadd.xlane.f32.xlu0 %v1587
    %v1673 = vpop.xlane.xlu0 %1672
    %1674 = vadd.xlane.f32.xlu0 %v1592
    %v1675 = vpop.xlane.xlu0 %1674
    %1676 = vadd.xlane.f32.xlu0 %v1595
    %v1677 = vpop.xlane.xlu0 %1676
    %1678 = vadd.xlane.f32.xlu0 %v1600
    %v1679 = vpop.xlane.xlu0 %1678
    %1680 = vadd.xlane.f32.xlu0 %v1603
    %v1681 = vpop.xlane.xlu0 %1680
    %v1682 = vmul.f32 %v1607, 0.03125
    %v1683 = vmul.f32 %v1609, 0.03125
    %v1684 = vmul.f32 %v1611, 0.03125
    %v1685 = vmul.f32 %v1613, 0.03125
    %v1686 = vmul.f32 %v1615, 0.03125
    %v1687 = vmul.f32 %v1617, 0.03125
    %v1688 = vmul.f32 %v1619, 0.03125
    %v1689 = vmul.f32 %v1621, 0.03125
    %v1690 = vmul.f32 %v1623, 0.03125
    %v1691 = vmul.f32 %v1625, 0.03125
    %v1692 = vmul.f32 %v1627, 0.03125
    %v1693 = vmul.f32 %v1629, 0.03125
    %v1694 = vmul.f32 %v1631, 0.03125
    %v1695 = vmul.f32 %v1633, 0.03125
    %v1696 = vmul.f32 %v1635, 0.03125
    %v1697 = vmul.f32 %v1637, 0.03125
    %v1698 = vmul.f32 %v1639, 0.03125
    %v1699 = vmul.f32 %v1641, 0.03125
    %v1700 = vmul.f32 %v1643, 0.03125
    %v1701 = vmul.f32 %v1645, 0.03125
    %v1702 = vmul.f32 %v1647, 0.03125
    %v1703 = vmul.f32 %v1649, 0.03125
    %v1704 = vmul.f32 %v1651, 0.03125
    %v1705 = vmul.f32 %v1653, 0.03125
    %v1706 = vmul.f32 %v1655, 0.03125
    %v1707 = vmul.f32 %v1657, 0.03125
    %v1708 = vmul.f32 %v1659, 0.03125
    %v1709 = vmul.f32 %v1661, 0.03125
    %v1710 = vmul.f32 %v1663, 0.03125
    %v1711 = vmul.f32 %v1665, 0.03125
    %v1712 = vmul.f32 %v1667, 0.03125
    %v1713 = vmul.f32 %v1669, 0.03125
    %v1714 = vmul.f32 %v1671, 0.03125
    %v1715 = vmul.f32 %v1673, 0.03125
    %v1716 = vmul.f32 %v1675, 0.03125
    %v1717 = vmul.f32 %v1677, 0.03125
    %v1718 = vmul.f32 %v1679, 0.03125
    %v1719 = vmul.f32 %v1681, 0.03125
    %v1720 = vmul.f32 %v1456, %v1456
    %v1721 = vmul.f32 %v1459, %v1459
    %v1722 = vmul.f32 %v1464, %v1464
    %v1723 = vmul.f32 %v1467, %v1467
    %v1724 = vmul.f32 %v1472, %v1472
    %v1725 = vmul.f32 %v1475, %v1475
    %v1726 = vmul.f32 %v1480, %v1480
    %v1727 = vmul.f32 %v1483, %v1483
    %v1728 = vmul.f32 %v1488, %v1488
    %v1729 = vmul.f32 %v1491, %v1491
    %v1730 = vmul.f32 %v1496, %v1496
    %v1731 = vmul.f32 %v1499, %v1499
    %v1732 = vmul.f32 %v1504, %v1504
    %v1733 = vmul.f32 %v1507, %v1507
    %v1734 = vmul.f32 %v1512, %v1512
    %v1735 = vmul.f32 %v1515, %v1515
    %v1736 = vmul.f32 %v1520, %v1520
    %v1737 = vmul.f32 %v1523, %v1523
    %v1738 = vmul.f32 %v1528, %v1528
    %v1739 = vmul.f32 %v1531, %v1531
    %v1740 = vmul.f32 %v1536, %v1536
    %v1741 = vmul.f32 %v1539, %v1539
    %v1742 = vmul.f32 %v1544, %v1544
    %v1743 = vmul.f32 %v1547, %v1547
    %v1744 = vmul.f32 %v1552, %v1552
    %v1745 = vmul.f32 %v1555, %v1555
    %v1746 = vmul.f32 %v1560, %v1560
    %v1747 = vmul.f32 %v1563, %v1563
    %v1748 = vmul.f32 %v1568, %v1568
    %v1749 = vmul.f32 %v1571, %v1571
    %v1750 = vmul.f32 %v1576, %v1576
    %v1751 = vmul.f32 %v1579, %v1579
    %v1752 = vmul.f32 %v1584, %v1584
    %v1753 = vmul.f32 %v1587, %v1587
    %v1754 = vmul.f32 %v1592, %v1592
    %v1755 = vmul.f32 %v1595, %v1595
    %v1756 = vmul.f32 %v1600, %v1600
    %v1757 = vmul.f32 %v1603, %v1603
    %1758 = vadd.xlane.f32.xlu0 %v1720
    %v1759 = vpop.xlane.xlu0 %1758
    %1760 = vadd.xlane.f32.xlu0 %v1721
    %v1761 = vpop.xlane.xlu0 %1760
    %1762 = vadd.xlane.f32.xlu0 %v1722
    %v1763 = vpop.xlane.xlu0 %1762
    %1764 = vadd.xlane.f32.xlu0 %v1723
    %v1765 = vpop.xlane.xlu0 %1764
    %1766 = vadd.xlane.f32.xlu0 %v1724
    %v1767 = vpop.xlane.xlu0 %1766
    %1768 = vadd.xlane.f32.xlu0 %v1725
    %v1769 = vpop.xlane.xlu0 %1768
    %1770 = vadd.xlane.f32.xlu0 %v1726
    %v1771 = vpop.xlane.xlu0 %1770
    %1772 = vadd.xlane.f32.xlu0 %v1727
    %v1773 = vpop.xlane.xlu0 %1772
    %1774 = vadd.xlane.f32.xlu0 %v1728
    %v1775 = vpop.xlane.xlu0 %1774
    %1776 = vadd.xlane.f32.xlu0 %v1729
    %v1777 = vpop.xlane.xlu0 %1776
    %1778 = vadd.xlane.f32.xlu0 %v1730
    %v1779 = vpop.xlane.xlu0 %1778
    %1780 = vadd.xlane.f32.xlu0 %v1731
    %v1781 = vpop.xlane.xlu0 %1780
    %1782 = vadd.xlane.f32.xlu0 %v1732
    %v1783 = vpop.xlane.xlu0 %1782
    %1784 = vadd.xlane.f32.xlu0 %v1733
    %v1785 = vpop.xlane.xlu0 %1784
    %1786 = vadd.xlane.f32.xlu0 %v1734
    %v1787 = vpop.xlane.xlu0 %1786
    %1788 = vadd.xlane.f32.xlu0 %v1735
    %v1789 = vpop.xlane.xlu0 %1788
    %1790 = vadd.xlane.f32.xlu0 %v1736
    %v1791 = vpop.xlane.xlu0 %1790
    %1792 = vadd.xlane.f32.xlu0 %v1737
    %v1793 = vpop.xlane.xlu0 %1792
    %1794 = vadd.xlane.f32.xlu0 %v1738
    %v1795 = vpop.xlane.xlu0 %1794
    %1796 = vadd.xlane.f32.xlu0 %v1739
    %v1797 = vpop.xlane.xlu0 %1796
    %1798 = vadd.xlane.f32.xlu0 %v1740
    %v1799 = vpop.xlane.xlu0 %1798
    %1800 = vadd.xlane.f32.xlu0 %v1741
    %v1801 = vpop.xlane.xlu0 %1800
    %1802 = vadd.xlane.f32.xlu0 %v1742
    %v1803 = vpop.xlane.xlu0 %1802
    %1804 = vadd.xlane.f32.xlu0 %v1743
    %v1805 = vpop.xlane.xlu0 %1804
    %1806 = vadd.xlane.f32.xlu0 %v1744
    %v1807 = vpop.xlane.xlu0 %1806
    %1808 = vadd.xlane.f32.xlu0 %v1745
    %v1809 = vpop.xlane.xlu0 %1808
    %1810 = vadd.xlane.f32.xlu0 %v1746
    %v1811 = vpop.xlane.xlu0 %1810
    %1812 = vadd.xlane.f32.xlu0 %v1747
    %v1813 = vpop.xlane.xlu0 %1812
    %1814 = vadd.xlane.f32.xlu0 %v1748
    %v1815 = vpop.xlane.xlu0 %1814
    %1816 = vadd.xlane.f32.xlu0 %v1749
    %v1817 = vpop.xlane.xlu0 %1816
    %1818 = vadd.xlane.f32.xlu0 %v1750
    %v1819 = vpop.xlane.xlu0 %1818
    %1820 = vadd.xlane.f32.xlu0 %v1751
    %v1821 = vpop.xlane.xlu0 %1820
    %1822 = vadd.xlane.f32.xlu0 %v1752
    %v1823 = vpop.xlane.xlu0 %1822
    %1824 = vadd.xlane.f32.xlu0 %v1753
    %v1825 = vpop.xlane.xlu0 %1824
    %1826 = vadd.xlane.f32.xlu0 %v1754
    %v1827 = vpop.xlane.xlu0 %1826
    %1828 = vadd.xlane.f32.xlu0 %v1755
    %v1829 = vpop.xlane.xlu0 %1828
    %1830 = vadd.xlane.f32.xlu0 %v1756
    %v1831 = vpop.xlane.xlu0 %1830
    %1832 = vadd.xlane.f32.xlu0 %v1757
    %v1833 = vpop.xlane.xlu0 %1832
    %v1834 = vmul.f32 %v1759, 0.03125
    %v1835 = vmul.f32 %v1761, 0.03125
    %v1836 = vmul.f32 %v1763, 0.03125
    %v1837 = vmul.f32 %v1765, 0.03125
    %v1838 = vmul.f32 %v1767, 0.03125
    %v1839 = vmul.f32 %v1769, 0.03125
    %v1840 = vmul.f32 %v1771, 0.03125
    %v1841 = vmul.f32 %v1773, 0.03125
    %v1842 = vmul.f32 %v1775, 0.03125
    %v1843 = vmul.f32 %v1777, 0.03125
    %v1844 = vmul.f32 %v1779, 0.03125
    %v1845 = vmul.f32 %v1781, 0.03125
    %v1846 = vmul.f32 %v1783, 0.03125
    %v1847 = vmul.f32 %v1785, 0.03125
    %v1848 = vmul.f32 %v1787, 0.03125
    %v1849 = vmul.f32 %v1789, 0.03125
    %v1850 = vmul.f32 %v1791, 0.03125
    %v1851 = vmul.f32 %v1793, 0.03125
    %v1852 = vmul.f32 %v1795, 0.03125
    %v1853 = vmul.f32 %v1797, 0.03125
    %v1854 = vmul.f32 %v1799, 0.03125
    %v1855 = vmul.f32 %v1801, 0.03125
    %v1856 = vmul.f32 %v1803, 0.03125
    %v1857 = vmul.f32 %v1805, 0.03125
    %v1858 = vmul.f32 %v1807, 0.03125
    %v1859 = vmul.f32 %v1809, 0.03125
    %v1860 = vmul.f32 %v1811, 0.03125
    %v1861 = vmul.f32 %v1813, 0.03125
    %v1862 = vmul.f32 %v1815, 0.03125
    %v1863 = vmul.f32 %v1817, 0.03125
    %v1864 = vmul.f32 %v1819, 0.03125
    %v1865 = vmul.f32 %v1821, 0.03125
    %v1866 = vmul.f32 %v1823, 0.03125
    %v1867 = vmul.f32 %v1825, 0.03125
    %v1868 = vmul.f32 %v1827, 0.03125
    %v1869 = vmul.f32 %v1829, 0.03125
    %v1870 = vmul.f32 %v1831, 0.03125
    %v1871 = vmul.f32 %v1833, 0.03125
    %v1872 = vmul.f32 %v1682, %v1682
    %v1873 = vmul.f32 %v1683, %v1683
    %v1874 = vmul.f32 %v1684, %v1684
    %v1875 = vmul.f32 %v1685, %v1685
    %v1876 = vmul.f32 %v1686, %v1686
    %v1877 = vmul.f32 %v1687, %v1687
    %v1878 = vmul.f32 %v1688, %v1688
    %v1879 = vmul.f32 %v1689, %v1689
    %v1880 = vmul.f32 %v1690, %v1690
    %v1881 = vmul.f32 %v1691, %v1691
    %v1882 = vmul.f32 %v1692, %v1692
    %v1883 = vmul.f32 %v1693, %v1693
    %v1884 = vmul.f32 %v1694, %v1694
    %v1885 = vmul.f32 %v1695, %v1695
    %v1886 = vmul.f32 %v1696, %v1696
    %v1887 = vmul.f32 %v1697, %v1697
    %v1888 = vmul.f32 %v1698, %v1698
    %v1889 = vmul.f32 %v1699, %v1699
    %v1890 = vmul.f32 %v1700, %v1700
    %v1891 = vmul.f32 %v1701, %v1701
    %v1892 = vmul.f32 %v1702, %v1702
    %v1893 = vmul.f32 %v1703, %v1703
    %v1894 = vmul.f32 %v1704, %v1704
    %v1895 = vmul.f32 %v1705, %v1705
    %v1896 = vmul.f32 %v1706, %v1706
    %v1897 = vmul.f32 %v1707, %v1707
    %v1898 = vmul.f32 %v1708, %v1708
    %v1899 = vmul.f32 %v1709, %v1709
    %v1900 = vmul.f32 %v1710, %v1710
    %v1901 = vmul.f32 %v1711, %v1711
    %v1902 = vmul.f32 %v1712, %v1712
    %v1903 = vmul.f32 %v1713, %v1713
    %v1904 = vmul.f32 %v1714, %v1714
    %v1905 = vmul.f32 %v1715, %v1715
    %v1906 = vmul.f32 %v1716, %v1716
    %v1907 = vmul.f32 %v1717, %v1717
    %v1908 = vmul.f32 %v1718, %v1718
    %v1909 = vmul.f32 %v1719, %v1719
    %v1910 = vsub.f32 %v1834, %v1872
    %v1911 = vsub.f32 %v1835, %v1873
    %v1912 = vsub.f32 %v1836, %v1874
    %v1913 = vsub.f32 %v1837, %v1875
    %v1914 = vsub.f32 %v1838, %v1876
    %v1915 = vsub.f32 %v1839, %v1877
    %v1916 = vsub.f32 %v1840, %v1878
    %v1917 = vsub.f32 %v1841, %v1879
    %v1918 = vsub.f32 %v1842, %v1880
    %v1919 = vsub.f32 %v1843, %v1881
    %v1920 = vsub.f32 %v1844, %v1882
    %v1921 = vsub.f32 %v1845, %v1883
    %v1922 = vsub.f32 %v1846, %v1884
    %v1923 = vsub.f32 %v1847, %v1885
    %v1924 = vsub.f32 %v1848, %v1886
    %v1925 = vsub.f32 %v1849, %v1887
    %v1926 = vsub.f32 %v1850, %v1888
    %v1927 = vsub.f32 %v1851, %v1889
    %v1928 = vsub.f32 %v1852, %v1890
    %v1929 = vsub.f32 %v1853, %v1891
    %v1930 = vsub.f32 %v1854, %v1892
    %v1931 = vsub.f32 %v1855, %v1893
    %v1932 = vsub.f32 %v1856, %v1894
    %v1933 = vsub.f32 %v1857, %v1895
    %v1934 = vsub.f32 %v1858, %v1896
    %v1935 = vsub.f32 %v1859, %v1897
    %v1936 = vsub.f32 %v1860, %v1898
    %v1937 = vsub.f32 %v1861, %v1899
    %v1938 = vsub.f32 %v1862, %v1900
    %v1939 = vsub.f32 %v1863, %v1901
    %v1940 = vsub.f32 %v1864, %v1902
    %v1941 = vsub.f32 %v1865, %v1903
    %v1942 = vsub.f32 %v1866, %v1904
    %v1943 = vsub.f32 %v1867, %v1905
    %v1944 = vsub.f32 %v1868, %v1906
    %v1945 = vsub.f32 %v1869, %v1907
    %v1946 = vsub.f32 %v1870, %v1908
    %v1947 = vsub.f32 %v1871, %v1909
    %v1948 = vmax.f32 %v1910, 0.0
    %v1949 = vmax.f32 %v1911, 0.0
    %v1950 = vmax.f32 %v1912, 0.0
    %v1951 = vmax.f32 %v1913, 0.0
    %v1952 = vmax.f32 %v1914, 0.0
    %v1953 = vmax.f32 %v1915, 0.0
    %v1954 = vmax.f32 %v1916, 0.0
    %v1955 = vmax.f32 %v1917, 0.0
    %v1956 = vmax.f32 %v1918, 0.0
    %v1957 = vmax.f32 %v1919, 0.0
    %v1958 = vmax.f32 %v1920, 0.0
    %v1959 = vmax.f32 %v1921, 0.0
    %v1960 = vmax.f32 %v1922, 0.0
    %v1961 = vmax.f32 %v1923, 0.0
    %v1962 = vmax.f32 %v1924, 0.0
    %v1963 = vmax.f32 %v1925, 0.0
    %v1964 = vmax.f32 %v1926, 0.0
    %v1965 = vmax.f32 %v1927, 0.0
    %v1966 = vmax.f32 %v1928, 0.0
    %v1967 = vmax.f32 %v1929, 0.0
    %v1968 = vmax.f32 %v1930, 0.0
    %v1969 = vmax.f32 %v1931, 0.0
    %v1970 = vmax.f32 %v1932, 0.0
    %v1971 = vmax.f32 %v1933, 0.0
    %v1972 = vmax.f32 %v1934, 0.0
    %v1973 = vmax.f32 %v1935, 0.0
    %v1974 = vmax.f32 %v1936, 0.0
    %v1975 = vmax.f32 %v1937, 0.0
    %v1976 = vmax.f32 %v1938, 0.0
    %v1977 = vmax.f32 %v1939, 0.0
    %v1978 = vmax.f32 %v1940, 0.0
    %v1979 = vmax.f32 %v1941, 0.0
    %v1980 = vmax.f32 %v1942, 0.0
    %v1981 = vmax.f32 %v1943, 0.0
    %v1982 = vmax.f32 %v1944, 0.0
    %v1983 = vmax.f32 %v1945, 0.0
    %v1984 = vmax.f32 %v1946, 0.0
    %v1985 = vmax.f32 %v1947, 0.0
    %v1986 = vsub.f32 %v1456, %v1682
    %v1987 = vsub.f32 %v1459, %v1683
    %v1988 = vsub.f32 %v1464, %v1684
    %v1989 = vsub.f32 %v1467, %v1685
    %v1990 = vsub.f32 %v1472, %v1686
    %v1991 = vsub.f32 %v1475, %v1687
    %v1992 = vsub.f32 %v1480, %v1688
    %v1993 = vsub.f32 %v1483, %v1689
    %v1994 = vsub.f32 %v1488, %v1690
    %v1995 = vsub.f32 %v1491, %v1691
    %v1996 = vsub.f32 %v1496, %v1692
    %v1997 = vsub.f32 %v1499, %v1693
    %v1998 = vsub.f32 %v1504, %v1694
    %v1999 = vsub.f32 %v1507, %v1695
    %v2000 = vsub.f32 %v1512, %v1696
    %v2001 = vsub.f32 %v1515, %v1697
    %v2002 = vsub.f32 %v1520, %v1698
    %v2003 = vsub.f32 %v1523, %v1699
    %v2004 = vsub.f32 %v1528, %v1700
    %v2005 = vsub.f32 %v1531, %v1701
    %v2006 = vsub.f32 %v1536, %v1702
    %v2007 = vsub.f32 %v1539, %v1703
    %v2008 = vsub.f32 %v1544, %v1704
    %v2009 = vsub.f32 %v1547, %v1705
    %v2010 = vsub.f32 %v1552, %v1706
    %v2011 = vsub.f32 %v1555, %v1707
    %v2012 = vsub.f32 %v1560, %v1708
    %v2013 = vsub.f32 %v1563, %v1709
    %v2014 = vsub.f32 %v1568, %v1710
    %v2015 = vsub.f32 %v1571, %v1711
    %v2016 = vsub.f32 %v1576, %v1712
    %v2017 = vsub.f32 %v1579, %v1713
    %v2018 = vsub.f32 %v1584, %v1714
    %v2019 = vsub.f32 %v1587, %v1715
    %v2020 = vsub.f32 %v1592, %v1716
    %v2021 = vsub.f32 %v1595, %v1717
    %v2022 = vsub.f32 %v1600, %v1718
    %v2023 = vsub.f32 %v1603, %v1719
    %v2024 = vadd.f32 %v1948, 0.001
    %v2025 = vadd.f32 %v1949, 0.001
    %v2026 = vadd.f32 %v1950, 0.001
    %v2027 = vadd.f32 %v1951, 0.001
    %v2028 = vadd.f32 %v1952, 0.001
    %v2029 = vadd.f32 %v1953, 0.001
    %v2030 = vadd.f32 %v1954, 0.001
    %v2031 = vadd.f32 %v1955, 0.001
    %v2032 = vadd.f32 %v1956, 0.001
    %v2033 = vadd.f32 %v1957, 0.001
    %v2034 = vadd.f32 %v1958, 0.001
    %v2035 = vadd.f32 %v1959, 0.001
    %v2036 = vadd.f32 %v1960, 0.001
    %v2037 = vadd.f32 %v1961, 0.001
    %v2038 = vadd.f32 %v1962, 0.001
    %v2039 = vadd.f32 %v1963, 0.001
    %v2040 = vadd.f32 %v1964, 0.001
    %v2041 = vadd.f32 %v1965, 0.001
    %v2042 = vadd.f32 %v1966, 0.001
    %v2043 = vadd.f32 %v1967, 0.001
    %v2044 = vadd.f32 %v1968, 0.001
    %v2045 = vadd.f32 %v1969, 0.001
    %v2046 = vadd.f32 %v1970, 0.001
    %v2047 = vadd.f32 %v1971, 0.001
    %v2048 = vadd.f32 %v1972, 0.001
    %v2049 = vadd.f32 %v1973, 0.001
    %v2050 = vadd.f32 %v1974, 0.001
    %v2051 = vadd.f32 %v1975, 0.001
    %v2052 = vadd.f32 %v1976, 0.001
    %v2053 = vadd.f32 %v1977, 0.001
    %v2054 = vadd.f32 %v1978, 0.001
    %v2055 = vadd.f32 %v1979, 0.001
    %v2056 = vadd.f32 %v1980, 0.001
    %v2057 = vadd.f32 %v1981, 0.001
    %v2058 = vadd.f32 %v1982, 0.001
    %v2059 = vadd.f32 %v1983, 0.001
    %v2060 = vadd.f32 %v1984, 0.001
    %v2061 = vadd.f32 %v1985, 0.001
    %v2062 = vrsqrt.pop %v2024
    %v2063 = vrsqrt.pop %v2025
    %v2064 = vrsqrt.pop %v2026
    %v2065 = vrsqrt.pop %v2027
    %v2066 = vrsqrt.pop %v2028
    %v2067 = vrsqrt.pop %v2029
    %v2068 = vrsqrt.pop %v2030
    %v2069 = vrsqrt.pop %v2031
    %v2070 = vrsqrt.pop %v2032
    %v2071 = vrsqrt.pop %v2033
    %v2072 = vrsqrt.pop %v2034
    %v2073 = vrsqrt.pop %v2035
    %v2074 = vrsqrt.pop %v2036
    %v2075 = vrsqrt.pop %v2037
    %v2076 = vrsqrt.pop %v2038
    %v2077 = vrsqrt.pop %v2039
    %v2078 = vrsqrt.pop %v2040
    %v2079 = vrsqrt.pop %v2041
    %v2080 = vrsqrt.pop %v2042
    %v2081 = vrsqrt.pop %v2043
    %v2082 = vrsqrt.pop %v2044
    %v2083 = vrsqrt.pop %v2045
    %v2084 = vrsqrt.pop %v2046
    %v2085 = vrsqrt.pop %v2047
    %v2086 = vrsqrt.pop %v2048
    %v2087 = vrsqrt.pop %v2049
    %v2088 = vrsqrt.pop %v2050
    %v2089 = vrsqrt.pop %v2051
    %v2090 = vrsqrt.pop %v2052
    %v2091 = vrsqrt.pop %v2053
    %v2092 = vrsqrt.pop %v2054
    %v2093 = vrsqrt.pop %v2055
    %v2094 = vrsqrt.pop %v2056
    %v2095 = vrsqrt.pop %v2057
    %v2096 = vrsqrt.pop %v2058
    %v2097 = vrsqrt.pop %v2059
    %v2098 = vrsqrt.pop %v2060
    %v2099 = vrsqrt.pop %v2061
    %v2100 = vmul.f32 %v1986, %v2062
    %v2101 = vmul.f32 %v1987, %v2063
    %v2102 = vmul.f32 %v1988, %v2064
    %v2103 = vmul.f32 %v1989, %v2065
    %v2104 = vmul.f32 %v1990, %v2066
    %v2105 = vmul.f32 %v1991, %v2067
    %v2106 = vmul.f32 %v1992, %v2068
    %v2107 = vmul.f32 %v1993, %v2069
    %v2108 = vmul.f32 %v1994, %v2070
    %v2109 = vmul.f32 %v1995, %v2071
    %v2110 = vmul.f32 %v1996, %v2072
    %v2111 = vmul.f32 %v1997, %v2073
    %v2112 = vmul.f32 %v1998, %v2074
    %v2113 = vmul.f32 %v1999, %v2075
    %v2114 = vmul.f32 %v2000, %v2076
    %v2115 = vmul.f32 %v2001, %v2077
    %v2116 = vmul.f32 %v2002, %v2078
    %v2117 = vmul.f32 %v2003, %v2079
    %v2118 = vmul.f32 %v2004, %v2080
    %v2119 = vmul.f32 %v2005, %v2081
    %v2120 = vmul.f32 %v2006, %v2082
    %v2121 = vmul.f32 %v2007, %v2083
    %v2122 = vmul.f32 %v2008, %v2084
    %v2123 = vmul.f32 %v2009, %v2085
    %v2124 = vmul.f32 %v2010, %v2086
    %v2125 = vmul.f32 %v2011, %v2087
    %v2126 = vmul.f32 %v2012, %v2088
    %v2127 = vmul.f32 %v2013, %v2089
    %v2128 = vmul.f32 %v2014, %v2090
    %v2129 = vmul.f32 %v2015, %v2091
    %v2130 = vmul.f32 %v2016, %v2092
    %v2131 = vmul.f32 %v2017, %v2093
    %v2132 = vmul.f32 %v2018, %v2094
    %v2133 = vmul.f32 %v2019, %v2095
    %v2134 = vmul.f32 %v2020, %v2096
    %v2135 = vmul.f32 %v2021, %v2097
    %v2136 = vmul.f32 %v2022, %v2098
    %v2137 = vmul.f32 %v2023, %v2099
    %v2139 = vlaneseq
    %v2140 = vshrl.u32 %v2139, 7
    %v2141 = vsub.s32 0, %v2140
    %v2142 = vrot.slane %v1351, %v2141
    %v2144 = vmul.f32 %v2100, %v2142
    %v2145 = vmul.f32 %v2101, %v2142
    %v2146 = vmul.f32 %v2102, %v2142
    %v2147 = vmul.f32 %v2103, %v2142
    %v2148 = vmul.f32 %v2104, %v2142
    %v2149 = vmul.f32 %v2105, %v2142
    %v2150 = vmul.f32 %v2106, %v2142
    %v2151 = vmul.f32 %v2107, %v2142
    %v2152 = vmul.f32 %v2108, %v2142
    %v2153 = vmul.f32 %v2109, %v2142
    %v2154 = vmul.f32 %v2110, %v2142
    %v2155 = vmul.f32 %v2111, %v2142
    %v2156 = vmul.f32 %v2112, %v2142
    %v2157 = vmul.f32 %v2113, %v2142
    %v2158 = vmul.f32 %v2114, %v2142
    %v2159 = vmul.f32 %v2115, %v2142
    %v2160 = vmul.f32 %v2116, %v2142
    %v2161 = vmul.f32 %v2117, %v2142
    %v2162 = vmul.f32 %v2118, %v2142
    %v2163 = vmul.f32 %v2119, %v2142
    %v2164 = vmul.f32 %v2120, %v2142
    %v2165 = vmul.f32 %v2121, %v2142
    %v2166 = vmul.f32 %v2122, %v2142
    %v2167 = vmul.f32 %v2123, %v2142
    %v2168 = vmul.f32 %v2124, %v2142
    %v2169 = vmul.f32 %v2125, %v2142
    %v2170 = vmul.f32 %v2126, %v2142
    %v2171 = vmul.f32 %v2127, %v2142
    %v2172 = vmul.f32 %v2128, %v2142
    %v2173 = vmul.f32 %v2129, %v2142
    %v2174 = vmul.f32 %v2130, %v2142
    %v2175 = vmul.f32 %v2131, %v2142
    %v2176 = vmul.f32 %v2132, %v2142
    %v2177 = vmul.f32 %v2133, %v2142
    %v2178 = vmul.f32 %v2134, %v2142
    %v2179 = vmul.f32 %v2135, %v2142
    %v2180 = vmul.f32 %v2136, %v2142
    %v2181 = vmul.f32 %v2137, %v2142
    %v2183 = vlaneseq
    %v2184 = vshrl.u32 %v2183, 7
    %v2185 = vsub.s32 0, %v2184
    %v2186 = vrot.slane %v1353, %v2185
    %v2188 = vadd.f32 %v2144, %v2186
    %v2189 = vadd.f32 %v2145, %v2186
    %v2190 = vadd.f32 %v2146, %v2186
    %v2191 = vadd.f32 %v2147, %v2186
    %v2192 = vadd.f32 %v2148, %v2186
    %v2193 = vadd.f32 %v2149, %v2186
    %v2194 = vadd.f32 %v2150, %v2186
    %v2195 = vadd.f32 %v2151, %v2186
    %v2196 = vadd.f32 %v2152, %v2186
    %v2197 = vadd.f32 %v2153, %v2186
    %v2198 = vadd.f32 %v2154, %v2186
    %v2199 = vadd.f32 %v2155, %v2186
    %v2200 = vadd.f32 %v2156, %v2186
    %v2201 = vadd.f32 %v2157, %v2186
    %v2202 = vadd.f32 %v2158, %v2186
    %v2203 = vadd.f32 %v2159, %v2186
    %v2204 = vadd.f32 %v2160, %v2186
    %v2205 = vadd.f32 %v2161, %v2186
    %v2206 = vadd.f32 %v2162, %v2186
    %v2207 = vadd.f32 %v2163, %v2186
    %v2208 = vadd.f32 %v2164, %v2186
    %v2209 = vadd.f32 %v2165, %v2186
    %v2210 = vadd.f32 %v2166, %v2186
    %v2211 = vadd.f32 %v2167, %v2186
    %v2212 = vadd.f32 %v2168, %v2186
    %v2213 = vadd.f32 %v2169, %v2186
    %v2214 = vadd.f32 %v2170, %v2186
    %v2215 = vadd.f32 %v2171, %v2186
    %v2216 = vadd.f32 %v2172, %v2186
    %v2217 = vadd.f32 %v2173, %v2186
    %v2218 = vadd.f32 %v2174, %v2186
    %v2219 = vadd.f32 %v2175, %v2186
    %v2220 = vadd.f32 %v2176, %v2186
    %v2221 = vadd.f32 %v2177, %v2186
    %v2222 = vadd.f32 %v2178, %v2186
    %v2223 = vadd.f32 %v2179, %v2186
    %v2224 = vadd.f32 %v2180, %v2186
    %v2225 = vadd.f32 %v2181, %v2186
    %v2226 = vsub.f32 0.0, %v2188
    %v2227 = vsub.f32 0.0, %v2189
    %v2228 = vsub.f32 0.0, %v2190
    %v2229 = vsub.f32 0.0, %v2191
    %v2230 = vsub.f32 0.0, %v2192
    %v2231 = vsub.f32 0.0, %v2193
    %v2232 = vsub.f32 0.0, %v2194
    %v2233 = vsub.f32 0.0, %v2195
    %v2234 = vsub.f32 0.0, %v2196
    %v2235 = vsub.f32 0.0, %v2197
    %v2236 = vsub.f32 0.0, %v2198
    %v2237 = vsub.f32 0.0, %v2199
    %v2238 = vsub.f32 0.0, %v2200
    %v2239 = vsub.f32 0.0, %v2201
    %v2240 = vsub.f32 0.0, %v2202
    %v2241 = vsub.f32 0.0, %v2203
    %v2242 = vsub.f32 0.0, %v2204
    %v2243 = vsub.f32 0.0, %v2205
    %v2244 = vsub.f32 0.0, %v2206
    %v2245 = vsub.f32 0.0, %v2207
    %v2246 = vsub.f32 0.0, %v2208
    %v2247 = vsub.f32 0.0, %v2209
    %v2248 = vsub.f32 0.0, %v2210
    %v2249 = vsub.f32 0.0, %v2211
    %v2250 = vsub.f32 0.0, %v2212
    %v2251 = vsub.f32 0.0, %v2213
    %v2252 = vsub.f32 0.0, %v2214
    %v2253 = vsub.f32 0.0, %v2215
    %v2254 = vsub.f32 0.0, %v2216
    %v2255 = vsub.f32 0.0, %v2217
    %v2256 = vsub.f32 0.0, %v2218
    %v2257 = vsub.f32 0.0, %v2219
    %v2258 = vsub.f32 0.0, %v2220
    %v2259 = vsub.f32 0.0, %v2221
    %v2260 = vsub.f32 0.0, %v2222
    %v2261 = vsub.f32 0.0, %v2223
    %v2262 = vsub.f32 0.0, %v2224
    %v2263 = vsub.f32 0.0, %v2225
    %v2264 = vmul.f32 %v2226, 1.442695
    %v2265 = vpow.pop %v2264
    %v2266 = vmul.f32 %v2227, 1.442695
    %v2267 = vpow.pop %v2266
    %v2268 = vmul.f32 %v2228, 1.442695
    %v2269 = vpow.pop %v2268
    %v2270 = vmul.f32 %v2229, 1.442695
    %v2271 = vpow.pop %v2270
    %v2272 = vmul.f32 %v2230, 1.442695
    %v2273 = vpow.pop %v2272
    %v2274 = vmul.f32 %v2231, 1.442695
    %v2275 = vpow.pop %v2274
    %v2276 = vmul.f32 %v2232, 1.442695
    %v2277 = vpow.pop %v2276
    %v2278 = vmul.f32 %v2233, 1.442695
    %v2279 = vpow.pop %v2278
    %v2280 = vmul.f32 %v2234, 1.442695
    %v2281 = vpow.pop %v2280
    %v2282 = vmul.f32 %v2235, 1.442695
    %v2283 = vpow.pop %v2282
    %v2284 = vmul.f32 %v2236, 1.442695
    %v2285 = vpow.pop %v2284
    %v2286 = vmul.f32 %v2237, 1.442695
    %v2287 = vpow.pop %v2286
    %v2288 = vmul.f32 %v2238, 1.442695
    %v2289 = vpow.pop %v2288
    %v2290 = vmul.f32 %v2239, 1.442695
    %v2291 = vpow.pop %v2290
    %v2292 = vmul.f32 %v2240, 1.442695
    %v2293 = vpow.pop %v2292
    %v2294 = vmul.f32 %v2241, 1.442695
    %v2295 = vpow.pop %v2294
    %v2296 = vmul.f32 %v2242, 1.442695
    %v2297 = vpow.pop %v2296
    %v2298 = vmul.f32 %v2243, 1.442695
    %v2299 = vpow.pop %v2298
    %v2300 = vmul.f32 %v2244, 1.442695
    %v2301 = vpow.pop %v2300
    %v2302 = vmul.f32 %v2245, 1.442695
    %v2303 = vpow.pop %v2302
    %v2304 = vmul.f32 %v2246, 1.442695
    %v2305 = vpow.pop %v2304
    %v2306 = vmul.f32 %v2247, 1.442695
    %v2307 = vpow.pop %v2306
    %v2308 = vmul.f32 %v2248, 1.442695
    %v2309 = vpow.pop %v2308
    %v2310 = vmul.f32 %v2249, 1.442695
    %v2311 = vpow.pop %v2310
    %v2312 = vmul.f32 %v2250, 1.442695
    %v2313 = vpow.pop %v2312
    %v2314 = vmul.f32 %v2251, 1.442695
    %v2315 = vpow.pop %v2314
    %v2316 = vmul.f32 %v2252, 1.442695
    %v2317 = vpow.pop %v2316
    %v2318 = vmul.f32 %v2253, 1.442695
    %v2319 = vpow.pop %v2318
    %v2320 = vmul.f32 %v2254, 1.442695
    %v2321 = vpow.pop %v2320
    %v2322 = vmul.f32 %v2255, 1.442695
    %v2323 = vpow.pop %v2322
    %v2324 = vmul.f32 %v2256, 1.442695
    %v2325 = vpow.pop %v2324
    %v2326 = vmul.f32 %v2257, 1.442695
    %v2327 = vpow.pop %v2326
    %v2328 = vmul.f32 %v2258, 1.442695
    %v2329 = vpow.pop %v2328
    %v2330 = vmul.f32 %v2259, 1.442695
    %v2331 = vpow.pop %v2330
    %v2332 = vmul.f32 %v2260, 1.442695
    %v2333 = vpow.pop %v2332
    %v2334 = vmul.f32 %v2261, 1.442695
    %v2335 = vpow.pop %v2334
    %v2336 = vmul.f32 %v2262, 1.442695
    %v2337 = vpow.pop %v2336
    %v2338 = vmul.f32 %v2263, 1.442695
    %v2339 = vpow.pop %v2338
    %v2340 = vadd.f32 %v2265, 1.0
    %v2341 = vadd.f32 %v2267, 1.0
    %v2342 = vadd.f32 %v2269, 1.0
    %v2343 = vadd.f32 %v2271, 1.0
    %v2344 = vadd.f32 %v2273, 1.0
    %v2345 = vadd.f32 %v2275, 1.0
    %v2346 = vadd.f32 %v2277, 1.0
    %v2347 = vadd.f32 %v2279, 1.0
    %v2348 = vadd.f32 %v2281, 1.0
    %v2349 = vadd.f32 %v2283, 1.0
    %v2350 = vadd.f32 %v2285, 1.0
    %v2351 = vadd.f32 %v2287, 1.0
    %v2352 = vadd.f32 %v2289, 1.0
    %v2353 = vadd.f32 %v2291, 1.0
    %v2354 = vadd.f32 %v2293, 1.0
    %v2355 = vadd.f32 %v2295, 1.0
    %v2356 = vadd.f32 %v2297, 1.0
    %v2357 = vadd.f32 %v2299, 1.0
    %v2358 = vadd.f32 %v2301, 1.0
    %v2359 = vadd.f32 %v2303, 1.0
    %v2360 = vadd.f32 %v2305, 1.0
    %v2361 = vadd.f32 %v2307, 1.0
    %v2362 = vadd.f32 %v2309, 1.0
    %v2363 = vadd.f32 %v2311, 1.0
    %v2364 = vadd.f32 %v2313, 1.0
    %v2365 = vadd.f32 %v2315, 1.0
    %v2366 = vadd.f32 %v2317, 1.0
    %v2367 = vadd.f32 %v2319, 1.0
    %v2368 = vadd.f32 %v2321, 1.0
    %v2369 = vadd.f32 %v2323, 1.0
    %v2370 = vadd.f32 %v2325, 1.0
    %v2371 = vadd.f32 %v2327, 1.0
    %v2372 = vadd.f32 %v2329, 1.0
    %v2373 = vadd.f32 %v2331, 1.0
    %v2374 = vadd.f32 %v2333, 1.0
    %v2375 = vadd.f32 %v2335, 1.0
    %v2376 = vadd.f32 %v2337, 1.0
    %v2377 = vadd.f32 %v2339, 1.0
    %v2378 = vrcp.pop %v2340
    %v2379 = vrcp.pop %v2341
    %v2380 = vrcp.pop %v2342
    %v2381 = vrcp.pop %v2343
    %v2382 = vrcp.pop %v2344
    %v2383 = vrcp.pop %v2345
    %v2384 = vrcp.pop %v2346
    %v2385 = vrcp.pop %v2347
    %v2386 = vrcp.pop %v2348
    %v2387 = vrcp.pop %v2349
    %v2388 = vrcp.pop %v2350
    %v2389 = vrcp.pop %v2351
    %v2390 = vrcp.pop %v2352
    %v2391 = vrcp.pop %v2353
    %v2392 = vrcp.pop %v2354
    %v2393 = vrcp.pop %v2355
    %v2394 = vrcp.pop %v2356
    %v2395 = vrcp.pop %v2357
    %v2396 = vrcp.pop %v2358
    %v2397 = vrcp.pop %v2359
    %v2398 = vrcp.pop %v2360
    %v2399 = vrcp.pop %v2361
    %v2400 = vrcp.pop %v2362
    %v2401 = vrcp.pop %v2363
    %v2402 = vrcp.pop %v2364
    %v2403 = vrcp.pop %v2365
    %v2404 = vrcp.pop %v2366
    %v2405 = vrcp.pop %v2367
    %v2406 = vrcp.pop %v2368
    %v2407 = vrcp.pop %v2369
    %v2408 = vrcp.pop %v2370
    %v2409 = vrcp.pop %v2371
    %v2410 = vrcp.pop %v2372
    %v2411 = vrcp.pop %v2373
    %v2412 = vrcp.pop %v2374
    %v2413 = vrcp.pop %v2375
    %v2414 = vrcp.pop %v2376
    %v2415 = vrcp.pop %v2377
    %v2416 = vmul.f32 %v2188, %v2378
    %v2417 = vmul.f32 %v2189, %v2379
    %v2418 = vmul.f32 %v2190, %v2380
    %v2419 = vmul.f32 %v2191, %v2381
    %v2420 = vmul.f32 %v2192, %v2382
    %v2421 = vmul.f32 %v2193, %v2383
    %v2422 = vmul.f32 %v2194, %v2384
    %v2423 = vmul.f32 %v2195, %v2385
    %v2424 = vmul.f32 %v2196, %v2386
    %v2425 = vmul.f32 %v2197, %v2387
    %v2426 = vmul.f32 %v2198, %v2388
    %v2427 = vmul.f32 %v2199, %v2389
    %v2428 = vmul.f32 %v2200, %v2390
    %v2429 = vmul.f32 %v2201, %v2391
    %v2430 = vmul.f32 %v2202, %v2392
    %v2431 = vmul.f32 %v2203, %v2393
    %v2432 = vmul.f32 %v2204, %v2394
    %v2433 = vmul.f32 %v2205, %v2395
    %v2434 = vmul.f32 %v2206, %v2396
    %v2435 = vmul.f32 %v2207, %v2397
    %v2436 = vmul.f32 %v2208, %v2398
    %v2437 = vmul.f32 %v2209, %v2399
    %v2438 = vmul.f32 %v2210, %v2400
    %v2439 = vmul.f32 %v2211, %v2401
    %v2440 = vmul.f32 %v2212, %v2402
    %v2441 = vmul.f32 %v2213, %v2403
    %v2442 = vmul.f32 %v2214, %v2404
    %v2443 = vmul.f32 %v2215, %v2405
    %v2444 = vmul.f32 %v2216, %v2406
    %v2445 = vmul.f32 %v2217, %v2407
    %v2446 = vmul.f32 %v2218, %v2408
    %v2447 = vmul.f32 %v2219, %v2409
    %v2448 = vmul.f32 %v2220, %v2410
    %v2449 = vmul.f32 %v2221, %v2411
    %v2450 = vmul.f32 %v2222, %v2412
    %v2451 = vmul.f32 %v2223, %v2413
    %v2452 = vmul.f32 %v2224, %v2414
    %v2453 = vmul.f32 %v2225, %v2415
    %v2454 = vpack.c.bf16 %v2417, %v2416
    %v2455 = vpack.c.bf16 %v2419, %v2418
    %v2456 = vpack.c.bf16 %v2421, %v2420
    %v2457 = vpack.c.bf16 %v2423, %v2422
    %v2458 = vpack.c.bf16 %v2425, %v2424
    %v2459 = vpack.c.bf16 %v2427, %v2426
    %v2460 = vpack.c.bf16 %v2429, %v2428
    %v2461 = vpack.c.bf16 %v2431, %v2430
    %v2462 = vpack.c.bf16 %v2433, %v2432
    %v2463 = vpack.c.bf16 %v2435, %v2434
    %v2464 = vpack.c.bf16 %v2437, %v2436
    %v2465 = vpack.c.bf16 %v2439, %v2438
    %v2466 = vpack.c.bf16 %v2441, %v2440
    %v2467 = vpack.c.bf16 %v2443, %v2442
    %v2468 = vpack.c.bf16 %v2445, %v2444
    %v2469 = vpack.c.bf16 %v2447, %v2446
    %v2470 = vpack.c.bf16 %v2449, %v2448
    %v2471 = vpack.c.bf16 %v2451, %v2450
    %v2472 = vpack.c.bf16 %v2453, %v2452
    %v2473 = vld [vmem:[#allocation8] sm:$0xf]
    %v2474 = vld [vmem:[#allocation8 + $0x4] sm:$0xf]
    %v2475 = vld [vmem:[#allocation8 + $0x8] sm:$0xf]
    %v2476 = vld [vmem:[#allocation8 + $0xc] sm:$0xf]
    %v2477 = vld [vmem:[#allocation8 + $0x10] sm:$0xf]
    %v2478 = vld [vmem:[#allocation8 + $0x14] sm:$0xf]
    %v2479 = vld [vmem:[#allocation8 + $0x18] sm:$0xf]
    %v2480 = vld [vmem:[#allocation8 + $0x1c] sm:$0xf]
    %v2481 = vld [vmem:[#allocation8 + $0x20] sm:$0xf]
    %v2482 = vld [vmem:[#allocation8 + $0x24] sm:$0xf]
    %v2483 = vld [vmem:[#allocation8 + $0x28] sm:$0xf]
    %v2484 = vld [vmem:[#allocation8 + $0x2c] sm:$0xf]
    %v2485 = vld [vmem:[#allocation8 + $0x30] sm:$0xf]
    %v2486 = vld [vmem:[#allocation8 + $0x34] sm:$0xf]
    %v2487 = vld [vmem:[#allocation8 + $0x38] sm:$0xf]
    %v2488 = vld [vmem:[#allocation8 + $0x3c] sm:$0xf]
    %v2489 = vld [vmem:[%s6] sm:$0x1]
    %v2491 = vlaneseq
    %v2492 = vshrl.u32 %v2491, 7
    %v2493 = vsub.s32 0, %v2492
    %v2494 = vrot.slane %v2489, %v2493
    %v2512 = vunpack.c.l.b16 %v2473
    %v2513 = vunpack.c.l.b16 %v2474
    %v2514 = vunpack.c.l.b16 %v2475
    %v2515 = vunpack.c.l.b16 %v2476
    %v2516 = vunpack.c.l.b16 %v2477
    %v2517 = vunpack.c.l.b16 %v2478
    %v2518 = vunpack.c.l.b16 %v2479
    %v2519 = vunpack.c.l.b16 %v2480
    %v2520 = vunpack.c.l.b16 %v2481
    %v2521 = vunpack.c.l.b16 %v2482
    %v2522 = vunpack.c.l.b16 %v2483
    %v2523 = vunpack.c.l.b16 %v2484
    %v2524 = vunpack.c.l.b16 %v2485
    %v2525 = vunpack.c.l.b16 %v2486
    %v2526 = vunpack.c.l.b16 %v2487
    %v2527 = vunpack.c.l.b16 %v2488
    %v2528 = vpack.c.b16 %v2513, %v2512
    %v2529 = vpack.c.b16 %v2515, %v2514
    %v2530 = vpack.c.b16 %v2517, %v2516
    %v2531 = vpack.c.b16 %v2519, %v2518
    %v2532 = vpack.c.b16 %v2521, %v2520
    %v2533 = vpack.c.b16 %v2523, %v2522
    %v2534 = vpack.c.b16 %v2525, %v2524
    %v2535 = vpack.c.b16 %v2527, %v2526
    %2544 = vmatprep.subr.bf16.mxu0 0
    %2545 = vmatpush1.bf16.msra.mxu0 %v2535
    %2546 = vmatprep.subr.bf16.mxu0 0
    %2547 = vmatpush1.bf16.msra.mxu0 %v2534
    %2548 = vmatprep.subr.bf16.mxu0 0
    %2549 = vmatpush1.bf16.msra.mxu0 %v2533
    %2550 = vmatprep.subr.bf16.mxu0 0
    %2551 = vmatpush1.bf16.msra.mxu0 %v2532
    %2552 = vmatprep.subr.bf16.mxu0 0
    %2553 = vmatpush1.bf16.msra.mxu0 %v2531
    %2554 = vmatprep.subr.bf16.mxu0 0
    %2555 = vmatpush1.bf16.msra.mxu0 %v2530
    %2556 = vmatprep.subr.bf16.mxu0 0
    %2557 = vmatpush1.bf16.msra.mxu0 %v2529
    %2558 = vmatprep.subr.bf16.mxu0 0
    %2559 = vmatpush1.bf16.msra.mxu0 %v2528
    %2560 = vmatprep.subr.bf16.mxu0 0
    %2561 = vmatpush2.bf16.msra.mxu0 0
    %2562 = vmatprep.subr.bf16.mxu0 0
    %2563 = vmatpush2.bf16.msra.mxu0 0
    %2564 = vmatprep.subr.bf16.mxu0 0
    %2565 = vmatpush2.bf16.msra.mxu0 0
    %2566 = vmatprep.subr.bf16.mxu0 0
    %2567 = vmatpush2.bf16.msra.mxu0 0
    %2568 = vmatprep.subr.bf16.mxu0 0
    %2569 = vmatpush2.bf16.msra.mxu0 0
    %2570 = vmatprep.subr.bf16.mxu0 0
    %2571 = vmatpush2.bf16.msra.mxu0 0
    %2572 = vmatprep.subr.bf16.mxu0 0
    %2573 = vmatpush2.bf16.msra.mxu0 0
    %2574 = vmatprep.subr.bf16.mxu0 0
    %2575 = vmatpush2.bf16.msra.mxu0 0
    %2576 = vmatprep.mubr.bf16.mxu0 0
    %2577 = vmatmul.mubr.bf16.gmra.mxu0 %v2454
    %v2578 = vpop.f32.mrf.mxu0
    %v2579 = vadd.f32 %v2494, %v2578
    %v2580 = vpop.f32.mrf.mxu0
    %v2581 = vpop.f32.mrf.mxu0
    %v2582 = vadd.f32 %v2494, %v2581
    %v2583 = vpop.f32.mrf.mxu0
    %2584 = vmatprep.mubr.bf16.mxu0 0
    %2585 = vmatmul.mubr.bf16.gmra.mxu0 %v2455
    %v2586 = vpop.f32.mrf.mxu0
    %v2587 = vadd.f32 %v2494, %v2586
    %v2588 = vpop.f32.mrf.mxu0
    %v2589 = vpop.f32.mrf.mxu0
    %v2590 = vadd.f32 %v2494, %v2589
    %v2591 = vpop.f32.mrf.mxu0
    %2592 = vmatprep.mubr.bf16.mxu0 0
    %2593 = vmatmul.mubr.bf16.gmra.mxu0 %v2456
    %v2594 = vpop.f32.mrf.mxu0
    %v2595 = vadd.f32 %v2494, %v2594
    %v2596 = vpop.f32.mrf.mxu0
    %v2597 = vpop.f32.mrf.mxu0
    %v2598 = vadd.f32 %v2494, %v2597
    %v2599 = vpop.f32.mrf.mxu0
    %2600 = vmatprep.mubr.bf16.mxu0 0
    %2601 = vmatmul.mubr.bf16.gmra.mxu0 %v2457
    %v2602 = vpop.f32.mrf.mxu0
    %v2603 = vadd.f32 %v2494, %v2602
    %v2604 = vpop.f32.mrf.mxu0
    %v2605 = vpop.f32.mrf.mxu0
    %v2606 = vadd.f32 %v2494, %v2605
    %v2607 = vpop.f32.mrf.mxu0
    %2608 = vmatprep.mubr.bf16.mxu0 0
    %2609 = vmatmul.mubr.bf16.gmra.mxu0 %v2458
    %v2610 = vpop.f32.mrf.mxu0
    %v2611 = vadd.f32 %v2494, %v2610
    %v2612 = vpop.f32.mrf.mxu0
    %v2613 = vpop.f32.mrf.mxu0
    %v2614 = vadd.f32 %v2494, %v2613
    %v2615 = vpop.f32.mrf.mxu0
    %2616 = vmatprep.mubr.bf16.mxu0 0
    %2617 = vmatmul.mubr.bf16.gmra.mxu0 %v2459
    %v2618 = vpop.f32.mrf.mxu0
    %v2619 = vadd.f32 %v2494, %v2618
    %v2620 = vpop.f32.mrf.mxu0
    %v2621 = vpop.f32.mrf.mxu0
    %v2622 = vadd.f32 %v2494, %v2621
    %v2623 = vpop.f32.mrf.mxu0
    %2624 = vmatprep.mubr.bf16.mxu0 0
    %2625 = vmatmul.mubr.bf16.gmra.mxu0 %v2460
    %v2626 = vpop.f32.mrf.mxu0
    %v2627 = vadd.f32 %v2494, %v2626
    %v2628 = vpop.f32.mrf.mxu0
    %v2629 = vpop.f32.mrf.mxu0
    %v2630 = vadd.f32 %v2494, %v2629
    %v2631 = vpop.f32.mrf.mxu0
    %2632 = vmatprep.mubr.bf16.mxu0 0
    %2633 = vmatmul.mubr.bf16.gmra.mxu0 %v2461
    %v2634 = vpop.f32.mrf.mxu0
    %v2635 = vadd.f32 %v2494, %v2634
    %v2636 = vpop.f32.mrf.mxu0
    %v2637 = vpop.f32.mrf.mxu0
    %v2638 = vadd.f32 %v2494, %v2637
    %v2639 = vpop.f32.mrf.mxu0
    %2640 = vmatprep.mubr.bf16.mxu0 0
    %2641 = vmatmul.mubr.bf16.gmra.mxu0 %v2462
    %v2642 = vpop.f32.mrf.mxu0
    %v2643 = vadd.f32 %v2494, %v2642
    %v2644 = vpop.f32.mrf.mxu0
    %v2645 = vpop.f32.mrf.mxu0
    %v2646 = vadd.f32 %v2494, %v2645
    %v2647 = vpop.f32.mrf.mxu0
    %2648 = vmatprep.mubr.bf16.mxu0 0
    %2649 = vmatmul.mubr.bf16.gmra.mxu0 %v2463
    %v2650 = vpop.f32.mrf.mxu0
    %v2651 = vadd.f32 %v2494, %v2650
    %v2652 = vpop.f32.mrf.mxu0
    %v2653 = vpop.f32.mrf.mxu0
    %v2654 = vadd.f32 %v2494, %v2653
    %v2655 = vpop.f32.mrf.mxu0
    %2656 = vmatprep.mubr.bf16.mxu0 0
    %2657 = vmatmul.mubr.bf16.gmra.mxu0 %v2464
    %v2658 = vpop.f32.mrf.mxu0
    %v2659 = vadd.f32 %v2494, %v2658
    %v2660 = vpop.f32.mrf.mxu0
    %v2661 = vpop.f32.mrf.mxu0
    %v2662 = vadd.f32 %v2494, %v2661
    %v2663 = vpop.f32.mrf.mxu0
    %2664 = vmatprep.mubr.bf16.mxu0 0
    %2665 = vmatmul.mubr.bf16.gmra.mxu0 %v2465
    %v2666 = vpop.f32.mrf.mxu0
    %v2667 = vadd.f32 %v2494, %v2666
    %v2668 = vpop.f32.mrf.mxu0
    %v2669 = vpop.f32.mrf.mxu0
    %v2670 = vadd.f32 %v2494, %v2669
    %v2671 = vpop.f32.mrf.mxu0
    %2672 = vmatprep.mubr.bf16.mxu0 0
    %2673 = vmatmul.mubr.bf16.gmra.mxu0 %v2466
    %v2674 = vpop.f32.mrf.mxu0
    %v2675 = vadd.f32 %v2494, %v2674
    %v2676 = vpop.f32.mrf.mxu0
    %v2677 = vpop.f32.mrf.mxu0
    %v2678 = vadd.f32 %v2494, %v2677
    %v2679 = vpop.f32.mrf.mxu0
    %2680 = vmatprep.mubr.bf16.mxu0 0
    %2681 = vmatmul.mubr.bf16.gmra.mxu0 %v2467
    %v2682 = vpop.f32.mrf.mxu0
    %v2683 = vadd.f32 %v2494, %v2682
    %v2684 = vpop.f32.mrf.mxu0
    %v2685 = vpop.f32.mrf.mxu0
    %v2686 = vadd.f32 %v2494, %v2685
    %v2687 = vpop.f32.mrf.mxu0
    %2688 = vmatprep.mubr.bf16.mxu0 0
    %2689 = vmatmul.mubr.bf16.gmra.mxu0 %v2468
    %v2690 = vpop.f32.mrf.mxu0
    %v2691 = vadd.f32 %v2494, %v2690
    %v2692 = vpop.f32.mrf.mxu0
    %v2693 = vpop.f32.mrf.mxu0
    %v2694 = vadd.f32 %v2494, %v2693
    %v2695 = vpop.f32.mrf.mxu0
    %2696 = vmatprep.mubr.bf16.mxu0 0
    %2697 = vmatmul.mubr.bf16.gmra.mxu0 %v2469
    %v2698 = vpop.f32.mrf.mxu0
    %v2699 = vadd.f32 %v2494, %v2698
    %v2700 = vpop.f32.mrf.mxu0
    %v2701 = vpop.f32.mrf.mxu0
    %v2702 = vadd.f32 %v2494, %v2701
    %v2703 = vpop.f32.mrf.mxu0
    %2704 = vmatprep.mubr.bf16.mxu0 0
    %2705 = vmatmul.mubr.bf16.gmra.mxu0 %v2470
    %v2706 = vpop.f32.mrf.mxu0
    %v2707 = vadd.f32 %v2494, %v2706
    %v2708 = vpop.f32.mrf.mxu0
    %v2709 = vpop.f32.mrf.mxu0
    %v2710 = vadd.f32 %v2494, %v2709
    %v2711 = vpop.f32.mrf.mxu0
    %2712 = vmatprep.mubr.bf16.mxu0 0
    %2713 = vmatmul.mubr.bf16.gmra.mxu0 %v2471
    %v2714 = vpop.f32.mrf.mxu0
    %v2715 = vadd.f32 %v2494, %v2714
    %v2716 = vpop.f32.mrf.mxu0
    %v2717 = vpop.f32.mrf.mxu0
    %v2718 = vadd.f32 %v2494, %v2717
    %v2719 = vpop.f32.mrf.mxu0
    %2720 = vmatprep.mubr.bf16.mxu0 0
    %2721 = vmatmul.mubr.bf16.gmra.mxu0 %v2472
    %v2722 = vpop.f32.mrf.mxu0
    %v2723 = vadd.f32 %v2494, %v2722
    %v2724 = vpop.f32.mrf.mxu0
    %v2725 = vpop.f32.mrf.mxu0
    %v2726 = vadd.f32 %v2494, %v2725
    %v2727 = vpop.f32.mrf.mxu0
    %2728 = vdwg.mxu0
    %v2729 = vtanh.pop %v2579
    %v2730 = vtanh.pop %v2582
    %v2731 = vtanh.pop %v2587
    %v2732 = vtanh.pop %v2590
    %v2733 = vtanh.pop %v2595
    %v2734 = vtanh.pop %v2598
    %v2735 = vtanh.pop %v2603
    %v2736 = vtanh.pop %v2606
    %v2737 = vtanh.pop %v2611
    %v2738 = vtanh.pop %v2614
    %v2739 = vtanh.pop %v2619
    %v2740 = vtanh.pop %v2622
    %v2741 = vtanh.pop %v2627
    %v2742 = vtanh.pop %v2630
    %v2743 = vtanh.pop %v2635
    %v2744 = vtanh.pop %v2638
    %v2745 = vtanh.pop %v2643
    %v2746 = vtanh.pop %v2646
    %v2747 = vtanh.pop %v2651
    %v2748 = vtanh.pop %v2654
    %v2749 = vtanh.pop %v2659
    %v2750 = vtanh.pop %v2662
    %v2751 = vtanh.pop %v2667
    %v2752 = vtanh.pop %v2670
    %v2753 = vtanh.pop %v2675
    %v2754 = vtanh.pop %v2678
    %v2755 = vtanh.pop %v2683
    %v2756 = vtanh.pop %v2686
    %v2757 = vtanh.pop %v2691
    %v2758 = vtanh.pop %v2694
    %v2759 = vtanh.pop %v2699
    %v2760 = vtanh.pop %v2702
    %v2761 = vtanh.pop %v2707
    %v2762 = vtanh.pop %v2710
    %v2763 = vtanh.pop %v2715
    %v2764 = vtanh.pop %v2718
    %v2765 = vtanh.pop %v2723
    %v2766 = vtanh.pop %v2726
    %v2767 = vpack.c.bf16 %v2730, %v2729
    %v2768 = vpack.c.bf16 %v2732, %v2731
    %v2769 = vpack.c.bf16 %v2734, %v2733
    %v2770 = vpack.c.bf16 %v2736, %v2735
    %v2771 = vpack.c.bf16 %v2738, %v2737
    %v2772 = vpack.c.bf16 %v2740, %v2739
    %v2773 = vpack.c.bf16 %v2742, %v2741
    %v2774 = vpack.c.bf16 %v2744, %v2743
    %v2775 = vpack.c.bf16 %v2746, %v2745
    %v2776 = vpack.c.bf16 %v2748, %v2747
    %v2777 = vpack.c.bf16 %v2750, %v2749
    %v2778 = vpack.c.bf16 %v2752, %v2751
    %v2779 = vpack.c.bf16 %v2754, %v2753
    %v2780 = vpack.c.bf16 %v2756, %v2755
    %v2781 = vpack.c.bf16 %v2758, %v2757
    %v2782 = vpack.c.bf16 %v2760, %v2759
    %v2783 = vpack.c.bf16 %v2762, %v2761
    %v2784 = vpack.c.bf16 %v2764, %v2763
    %v2785 = vpack.c.bf16 %v2766, %v2765
    %v2805 = vunpack.c.l.b16 %v2767
    %v2806 = vunpack.c.h.b16 %v2767
    %v2807 = vunpack.c.l.b16 %v2768
    %v2808 = vunpack.c.h.b16 %v2768
    %v2809 = vunpack.c.l.b16 %v2769
    %v2810 = vunpack.c.h.b16 %v2769
    %v2811 = vunpack.c.l.b16 %v2770
    %v2812 = vunpack.c.h.b16 %v2770
    %v2813 = vunpack.c.l.b16 %v2771
    %v2814 = vunpack.c.h.b16 %v2771
    %v2815 = vunpack.c.l.b16 %v2772
    %v2816 = vunpack.c.h.b16 %v2772
    %v2817 = vunpack.c.l.b16 %v2773
    %v2818 = vunpack.c.h.b16 %v2773
    %v2819 = vunpack.c.l.b16 %v2774
    %v2820 = vunpack.c.h.b16 %v2774
    %v2821 = vunpack.c.l.b16 %v2775
    %v2822 = vunpack.c.h.b16 %v2775
    %v2823 = vunpack.c.l.b16 %v2776
    %v2824 = vunpack.c.h.b16 %v2776
    %v2825 = vunpack.c.l.b16 %v2777
    %v2826 = vunpack.c.h.b16 %v2777
    %v2827 = vunpack.c.l.b16 %v2778
    %v2828 = vunpack.c.h.b16 %v2778
    %v2829 = vunpack.c.l.b16 %v2779
    %v2830 = vunpack.c.h.b16 %v2779
    %v2831 = vunpack.c.l.b16 %v2780
    %v2832 = vunpack.c.h.b16 %v2780
    %v2833 = vunpack.c.l.b16 %v2781
    %v2834 = vunpack.c.h.b16 %v2781
    %v2835 = vunpack.c.l.b16 %v2782
    %v2836 = vunpack.c.h.b16 %v2782
    %v2837 = vunpack.c.l.b16 %v2783
    %v2838 = vunpack.c.h.b16 %v2783
    %v2839 = vunpack.c.l.b16 %v2784
    %v2840 = vunpack.c.h.b16 %v2784
    %v2841 = vunpack.c.l.b16 %v2785
    %v2842 = vunpack.c.h.b16 %v2785
    %v2843 = vpack.c.b16 %v2805, %v2805
    %v2844 = vpack.c.b16 %v2806, %v2806
    %v2845 = vpack.c.b16 %v2807, %v2807
    %v2846 = vpack.c.b16 %v2808, %v2808
    %v2847 = vpack.c.b16 %v2809, %v2809
    %v2848 = vpack.c.b16 %v2810, %v2810
    %v2849 = vpack.c.b16 %v2811, %v2811
    %v2850 = vpack.c.b16 %v2812, %v2812
    %v2851 = vpack.c.b16 %v2813, %v2813
    %v2852 = vpack.c.b16 %v2814, %v2814
    %v2853 = vpack.c.b16 %v2815, %v2815
    %v2854 = vpack.c.b16 %v2816, %v2816
    %v2855 = vpack.c.b16 %v2817, %v2817
    %v2856 = vpack.c.b16 %v2818, %v2818
    %v2857 = vpack.c.b16 %v2819, %v2819
    %v2858 = vpack.c.b16 %v2820, %v2820
    %v2859 = vpack.c.b16 %v2821, %v2821
    %v2860 = vpack.c.b16 %v2822, %v2822
    %v2861 = vpack.c.b16 %v2823, %v2823
    %v2862 = vpack.c.b16 %v2824, %v2824
    %v2863 = vpack.c.b16 %v2825, %v2825
    %v2864 = vpack.c.b16 %v2826, %v2826
    %v2865 = vpack.c.b16 %v2827, %v2827
    %v2866 = vpack.c.b16 %v2828, %v2828
    %v2867 = vpack.c.b16 %v2829, %v2829
    %v2868 = vpack.c.b16 %v2830, %v2830
    %v2869 = vpack.c.b16 %v2831, %v2831
    %v2870 = vpack.c.b16 %v2832, %v2832
    %v2871 = vpack.c.b16 %v2833, %v2833
    %v2872 = vpack.c.b16 %v2834, %v2834
    %v2873 = vpack.c.b16 %v2835, %v2835
    %v2874 = vpack.c.b16 %v2836, %v2836
    %v2875 = vpack.c.b16 %v2837, %v2837
    %v2876 = vpack.c.b16 %v2838, %v2838
    %v2877 = vpack.c.b16 %v2839, %v2839
    %v2878 = vpack.c.b16 %v2840, %v2840
    %v2879 = vpack.c.b16 %v2841, %v2841
    %v2880 = vpack.c.b16 %v2842, %v2842
    %2919 = vst [vmem:[#allocation10] sm:$0xf] %v2843
    %2920 = vst [vmem:[#allocation10 + $0x4] sm:$0xf] %v2844
    %2921 = vst [vmem:[#allocation10 + $0x8] sm:$0xf] %v2845
    %2922 = vst [vmem:[#allocation10 + $0xc] sm:$0xf] %v2846
    %2923 = vst [vmem:[#allocation10 + $0x10] sm:$0xf] %v2847
    %2924 = vst [vmem:[#allocation10 + $0x14] sm:$0xf] %v2848
    %2925 = vst [vmem:[#allocation10 + $0x18] sm:$0xf] %v2849
    %2926 = vst [vmem:[#allocation10 + $0x1c] sm:$0xf] %v2850
    %2927 = vst [vmem:[#allocation10 + $0x20] sm:$0xf] %v2851
    %2928 = vst [vmem:[#allocation10 + $0x24] sm:$0xf] %v2852
    %2929 = vst [vmem:[#allocation10 + $0x28] sm:$0xf] %v2853
    %2930 = vst [vmem:[#allocation10 + $0x2c] sm:$0xf] %v2854
    %2931 = vst [vmem:[#allocation10 + $0x30] sm:$0xf] %v2855
    %2932 = vst [vmem:[#allocation10 + $0x34] sm:$0xf] %v2856
    %2933 = vst [vmem:[#allocation10 + $0x38] sm:$0xf] %v2857
    %2934 = vst [vmem:[#allocation10 + $0x3c] sm:$0xf] %v2858
    %2935 = vst [vmem:[#allocation10 + $0x40] sm:$0xf] %v2859
    %2936 = vst [vmem:[#allocation10 + $0x44] sm:$0xf] %v2860
    %2937 = vst [vmem:[#allocation10 + $0x48] sm:$0xf] %v2861
    %2938 = vst [vmem:[#allocation10 + $0x4c] sm:$0xf] %v2862
    %2939 = vst [vmem:[#allocation10 + $0x50] sm:$0xf] %v2863
    %2940 = vst [vmem:[#allocation10 + $0x54] sm:$0xf] %v2864
    %2941 = vst [vmem:[#allocation10 + $0x58] sm:$0xf] %v2865
    %2942 = vst [vmem:[#allocation10 + $0x5c] sm:$0xf] %v2866
    %2943 = vst [vmem:[#allocation10 + $0x60] sm:$0xf] %v2867
    %2944 = vst [vmem:[#allocation10 + $0x64] sm:$0xf] %v2868
    %2945 = vst [vmem:[#allocation10 + $0x68] sm:$0xf] %v2869
    %2946 = vst [vmem:[#allocation10 + $0x6c] sm:$0xf] %v2870
    %2947 = vst [vmem:[#allocation10 + $0x70] sm:$0xf] %v2871
    %2948 = vst [vmem:[#allocation10 + $0x74] sm:$0xf] %v2872
    %2949 = vst [vmem:[#allocation10 + $0x78] sm:$0xf] %v2873
    %2950 = vst [vmem:[#allocation10 + $0x7c] sm:$0xf] %v2874
    %2951 = vst [vmem:[#allocation10 + $0x80] sm:$0xf] %v2875
    %2952 = vst [vmem:[#allocation10 + $0x84] sm:$0xf] %v2876
    %2953 = vst [vmem:[#allocation10 + $0x88] sm:$0xf] %v2877
    %2954 = vst [vmem:[#allocation10 + $0x8c] sm:$0xf] %v2878
    %2955 = vst [vmem:[#allocation10 + $0x90] sm:$0xf] %v2879
    %2956 = vst [vmem:[#allocation10 + $0x94] sm:$0xf] %v2880
    // Predicated region
    $region46: #{tpu_custom_call.1} parent=1 // pred_check
      _
    $region47: #{tpu_custom_call.1} parent=1 // pred_check_branch
      %2958 = sbr.rel (0) target = $region49
    $region48: #{tpu_custom_call.1} parent=1 // pred_region
      %s2960 = ssub.s32 2432, 2432
      %2961 = vsyncadd [#allocation4], %s2960
      %s2962 = sshll.u32 [#allocation10], 4
      %s2963 = int_to_ptr.vmem [resolvable:$true] %s2962
      %2968 = dma.vmem_to_hbm [thread:$0]  %s2963, 2432, %s7, [#allocation4], 64, 64, 4
    $region49: #{tpu_custom_call.1} parent=1 // pred_fallthru
      _
    // Predicated region
    $region50: #{tpu_custom_call.1} parent=1 // pred_check
      _
    $region51: #{tpu_custom_call.1} parent=1 // pred_check_branch
      %2970 = sbr.rel (0) target = $region53
    $region52: #{tpu_custom_call.1} parent=1 // pred_region
      %2971 = dma.done [#allocation4], 2432
    $region53: #{tpu_custom_call.1} parent=1 // pred_fallthru
      _
    %2972 = vsyncpa [#allocation3], 1
    %2973 = vsyncpa [#allocation6], 1
    %2974 = vsyncpa [#allocation9], 1
    %2975 = vsyncpa [#allocation4], 1

</llo_original>
